<compile_context>
chip_gen: v6e
topology: v6e:2x2x1
jax: 0.10.0
libtpu: 0.0.40
codegen_flags: <defaults>
</compile_context>

<pallas_src>
import jax
import jax.numpy as jnp
from jax.experimental import pallas as pl
from jax.experimental.pallas import tpu as pltpu


def _layernorm_noaffine(x, eps=1e-5):
    mu = jnp.mean(x, axis=-1, keepdims=True)
    var = jnp.mean((x - mu) ** 2, axis=-1, keepdims=True)
    return (x - mu) * jax.lax.rsqrt(var + eps)


def _ori_load_token_kernel(
    tokens_ref, text_ref, mask_ref,
    wq_ref, wkv_ref, wp_ref, bqp_ref, bkv_ref,
    out_ref,
):
    Bt, N, D = tokens_ref.shape
    S = text_ref.shape[1]
    KV = text_ref.shape[2]

    tok = tokens_ref[...]        # (Bt, N, D)
    txt = text_ref[...]          # (Bt, S, KV)
    msk = mask_ref[...]          # (Bt, 1, S)  float {0,1}

    # LayerNorms: gamma/beta are pre-folded into wq/wkv and the biases, so only the
    # normalization itself runs here (f32 math, VPU + EUP rsqrt).
    q_in = _layernorm_noaffine(tok)     # (Bt, N, D)
    k_in = _layernorm_noaffine(txt)     # (Bt, S, KV)

    # q projection -- attention scale and normq affine are pre-folded into wq / bq.
    q = jnp.dot(q_in.reshape(Bt * N, D), wq_ref[...],
                preferred_element_type=jnp.float32) + bqp_ref[0]
    q = q.reshape(Bt, N, D)

    # Fused k|v projection: one 768-contraction MXU pass with 2*D output lanes.
    # normk affine is pre-folded into wkv / bkv.
    kv = jnp.dot(k_in.reshape(Bt * S, KV), wkv_ref[...],
                 preferred_element_type=jnp.float32) + bkv_ref[0]   # (Bt*S, 2D)
    k = kv[:, :D].reshape(Bt, S, D)
    v = kv[:, D:].reshape(Bt, S, D)

    # Additive pad mask only.  For padded positions exp(score - 1e4 - rowmax)
    # underflows to exactly 0 in f32, so the reference's k*mask / v*mask
    # multiplies are redundant for any row with at least one valid position.
    neg = 10000.0 * msk - 10000.0                                   # (Bt, 1, S)
    attn = jnp.einsum('bnd,bsd->bns', q, k,
                      preferred_element_type=jnp.float32) + neg     # (Bt, N, S)
    attn = attn - jnp.max(attn, axis=-1, keepdims=True)
    p = jnp.exp(attn)
    p = p / jnp.sum(p, axis=-1, keepdims=True)

    ctx = jnp.einsum('bns,bsd->bnd', p, v,
                     preferred_element_type=jnp.float32)            # (Bt, N, D)

    # Fully-padded rows: the reference masks v to zero, giving a zero context
    # (the proj bias + residual still apply).  Replicate that exactly.
    any_valid = jnp.max(msk, axis=-1, keepdims=True) > 0.0          # (Bt, 1, 1)
    ctx = jnp.where(any_valid, ctx, 0.0)

    out = jnp.dot(ctx.reshape(Bt * N, D), wp_ref[...],
                  preferred_element_type=jnp.float32) + bqp_ref[1]
    out_ref[...] = (tok + out.reshape(Bt, N, D)).astype(out_ref.dtype)


def pack_ori_load_token_params(params, token_dim):
    """One-time weight transform: fold attention scale + LayerNorm affines, fuse k|v."""
    scale = float(token_dim) ** -0.5
    gq, bq_ln = params["gq"], params["bq"]          # (1, D)
    gk, bk_ln = params["gk"], params["bk"]          # (1, KV)
    wq, bwq = params["wq"], params["bwq"]           # (D, D), (1, D)
    wp, bwp = params["wp"], params["bwp"]           # (D, D), (1, D)

    wkv = jnp.concatenate([params["wk"], params["wv"]], axis=1)     # (KV, 2D)
    bkv = jnp.concatenate([params["bwk"], params["bwv"]], axis=1)   # (1, 2D)

    return {
        # normq gamma + attention scale folded in.
        "wq": scale * (gq.T * wq),                                          # (D, D)
        # normk gamma folded in.
        "wkv": gk.T * wkv,                                                  # (KV, 2D)
        "wp": wp,                                                           # (D, D)
        # row 0: q bias (normq beta folded, scaled); row 1: output proj bias.
        "bqp": jnp.concatenate([scale * (bq_ln @ wq + bwq), bwp], axis=0),  # (2, D)
        # normk beta folded into the fused k|v bias.
        "bkv": bk_ln @ wkv + bkv,                                           # (1, 2D)
    }


def _pick_batch_block(B, batch_tile):
    """Largest divisor of B <= batch_tile, preferring a grid of length >= 2 (megacore)."""
    divisors = [d for d in range(1, B + 1) if B % d == 0 and d <= batch_tile]
    multi = [d for d in divisors if B // d >= 2]
    return max(multi) if multi else max(divisors)


def ori_load_token(tokens, text, pad_mask, packed, *, batch_tile=128):
    """tokens: (B,N,D) f32, text: (B,KV,S) f32, pad_mask: (B,S,1) f32 in {0,1}."""
    B, N, D = tokens.shape
    _, KV, S = text.shape

    # Glue: matches text.permute(0, 2, 1) and pad_mask[..., 0][:, None, :] in PyTorch.
    text_t = jnp.transpose(text, (0, 2, 1))          # (B, S, KV)
    mask_1s = jnp.transpose(pad_mask, (0, 2, 1))     # (B, 1, S) -- S on lanes
    # TODO(synk): the text permute is still a standalone XLA op (one extra HBM pass over
    # the largest input); fold it into the kernel (in-kernel XLU transpose or
    # allow_input_fusion) if it shows up in profiles.

    Bt = _pick_batch_block(B, batch_tile)
    grid = (B // Bt,)

    def batched(shape):
        return pl.BlockSpec(shape, lambda b: (b, 0, 0))

    def bcast(shape):
        return pl.BlockSpec(shape, lambda b: tuple(0 for _ in shape))

    grid_spec = pltpu.PrefetchScalarGridSpec(
        num_scalar_prefetch=0,
        grid=grid,
        in_specs=[
            batched((Bt, N, D)),        # tokens
            batched((Bt, S, KV)),       # text (permuted)
            batched((Bt, 1, S)),        # pad mask
            bcast((D, D)),              # wq  (scale + normq gamma folded)
            bcast((KV, 2 * D)),         # wk|wv fused (normk gamma folded)
            bcast((D, D)),              # wp
            bcast((2, D)),              # bq (folded, scaled) | bp
            bcast((1, 2 * D)),          # bk|bv fused (normk beta folded)
        ],
        out_specs=batched((Bt, N, D)),
    )

    return pl.pallas_call(
        _ori_load_token_kernel,
        out_shape=jax.ShapeDtypeStruct((B, N, D), tokens.dtype),
        grid_spec=grid_spec,
        compiler_params=pltpu.CompilerParams(
            dimension_semantics=("parallel",),
            vmem_limit_bytes=48 * 1024 * 1024,   # above 32 MiB default, under v7x 64 MiB
        ),
    )(
        tokens, text_t, mask_1s,
        packed["wq"], packed["wkv"], packed["wp"], packed["bqp"], packed["bkv"],
    )


def _layernorm_ref(x, gamma, beta, eps=1e-5):
    mu = jnp.mean(x, axis=-1, keepdims=True)
    var = jnp.mean((x - mu) ** 2, axis=-1, keepdims=True)
    return (x - mu) * jax.lax.rsqrt(var + eps) * gamma + beta


def _reference(tokens, text, pad_mask, params):
    """Pure-JAX reference mirroring the PyTorch forward (eval mode, drop=0)."""
    B, N, D = tokens.shape
    text_t = jnp.transpose(text, (0, 2, 1))
    q_in = _layernorm_ref(tokens, params["gq"][0], params["bq"][0])
    k_in = _layernorm_ref(text_t, params["gk"][0], params["bk"][0])
    q = q_in @ params["wq"] + params["bwq"][0]
    k = k_in @ params["wk"] + params["bwk"][0]
    v = k_in @ params["wv"] + params["bwv"][0]
    msk = pad_mask                                  # (B, S, 1)
    k = k * msk
    v = v * msk
    attn = jnp.einsum("bnd,bsd->bns", q, k) * (float(D) ** -0.5)
    attn = attn + (10000.0 * jnp.transpose(msk, (0, 2, 1)) - 10000.0)
    attn = jax.nn.softmax(attn, axis=-1)
    out = jnp.einsum("bns,bsd->bnd", attn, v)
    out = out @ params["wp"] + params["bwp"][0]
    return tokens + out


if __name__ == "__main__":
    B, N, D, S, KV = 4, 8, 32, 16, 768  # token_dim=32, text hidden=768, seq len 16

    key = jax.random.PRNGKey(0)
    ks = jax.random.split(key, 14)

    tokens = jax.random.normal(ks[0], (B, N, D), jnp.float32)
    text = jax.random.normal(ks[1], (B, KV, S), jnp.float32)
    lengths = jnp.array([12, 9, 16, 0], dtype=jnp.int32)   # includes a fully-padded row
    pad_mask = (jnp.arange(S)[None, :] < lengths[:, None]).astype(jnp.float32)[..., None]  # (B,S,1)

    # Deterministic synthetic parameters (qkv_bias=True, proj bias present; drop=0.0).
    # LayerNorm gamma/beta are non-trivial so the affine fold is actually exercised.
    params = {
        "gq": 1.0 + 0.1 * jax.random.normal(ks[10], (1, D), jnp.float32),
        "bq": 0.05 * jax.random.normal(ks[11], (1, D), jnp.float32),
        "gk": 1.0 + 0.1 * jax.random.normal(ks[12], (1, KV), jnp.float32),
        "bk": 0.05 * jax.random.normal(ks[13], (1, KV), jnp.float32),
        "wq": 0.02 * jax.random.normal(ks[2], (D, D), jnp.float32),
        "bwq": 0.02 * jax.random.normal(ks[3], (1, D), jnp.float32),
        "wk": 0.02 * jax.random.normal(ks[4], (KV, D), jnp.float32),
        "bwk": 0.02 * jax.random.normal(ks[5], (1, D), jnp.float32),
        "wv": 0.02 * jax.random.normal(ks[6], (KV, D), jnp.float32),
        "bwv": 0.02 * jax.random.normal(ks[7], (1, D), jnp.float32),
        "wp": 0.02 * jax.random.normal(ks[8], (D, D), jnp.float32),
        "bwp": 0.02 * jax.random.normal(ks[9], (1, D), jnp.float32),
    }

    packed = pack_ori_load_token_params(params, D)   # one-time weight transform

    out = ori_load_token(tokens, text, pad_mask, packed)
    out = jax.block_until_ready(out)

    ref = _reference(tokens, text, pad_mask, params)
    assert out.shape == (B, N, D)
    assert jnp.allclose(out, ref, atol=1e-4, rtol=1e-4), "mismatch vs reference"

    print("KERNEL_OK")
</pallas_src>

<mosaic_0001>
module attributes {stable_mosaic.version = 11 : i64} {
  func.func @_ori_load_token_kernel(%arg0: i32, %arg1: memref<2x8x32xf32, #tpu.memory_space<vmem>>, %arg2: memref<2x16x768xf32, #tpu.memory_space<vmem>>, %arg3: memref<2x1x16xf32, #tpu.memory_space<vmem>>, %arg4: memref<32x32xf32, #tpu.memory_space<vmem>>, %arg5: memref<768x64xf32, #tpu.memory_space<vmem>>, %arg6: memref<32x32xf32, #tpu.memory_space<vmem>>, %arg7: memref<2x32xf32, #tpu.memory_space<vmem>>, %arg8: memref<1x64xf32, #tpu.memory_space<vmem>>, %arg9: memref<2x8x32xf32, #tpu.memory_space<vmem>>) attributes {dimension_semantics = [#tpu.dimension_semantics<parallel>], iteration_bounds = array<i64: 2>, scalar_prefetch = 0 : i64, scratch_operands = 0 : i64, tpu.core_type = #tpu.core_type<tc>, window_params = [{transform_indices = @transform_0, window_bounds = array<i64: 2, 8, 32>}, {transform_indices = @transform_1, window_bounds = array<i64: 2, 16, 768>}, {transform_indices = @transform_2, window_bounds = array<i64: 2, 1, 16>}, {pipeline_mode = #tpu.pipeline_mode<synchronous>, transform_indices = @transform_3, window_bounds = array<i64: 32, 32>}, {pipeline_mode = #tpu.pipeline_mode<synchronous>, transform_indices = @transform_4, window_bounds = array<i64: 768, 64>}, {pipeline_mode = #tpu.pipeline_mode<synchronous>, transform_indices = @transform_5, window_bounds = array<i64: 32, 32>}, {pipeline_mode = #tpu.pipeline_mode<synchronous>, transform_indices = @transform_6, window_bounds = array<i64: 2, 32>}, {pipeline_mode = #tpu.pipeline_mode<synchronous>, transform_indices = @transform_7, window_bounds = array<i64: 1, 64>}, {transform_indices = @transform_8, window_bounds = array<i64: 2, 8, 32>}]} {
    %c0 = arith.constant 0 : index
    %c0_0 = arith.constant 0 : index
    %c0_1 = arith.constant 0 : index
    %0 = vector.load %arg1[%c0, %c0_0, %c0_1] : memref<2x8x32xf32, #tpu.memory_space<vmem>>, vector<2x8x32xf32>
    %c0_2 = arith.constant 0 : index
    %c0_3 = arith.constant 0 : index
    %c0_4 = arith.constant 0 : index
    %1 = vector.load %arg2[%c0_2, %c0_3, %c0_4] : memref<2x16x768xf32, #tpu.memory_space<vmem>>, vector<2x16x768xf32>
    %c0_5 = arith.constant 0 : index
    %c0_6 = arith.constant 0 : index
    %c0_7 = arith.constant 0 : index
    %2 = vector.load %arg3[%c0_5, %c0_6, %c0_7] : memref<2x1x16xf32, #tpu.memory_space<vmem>>, vector<2x1x16xf32>
    %cst = arith.constant dense<0.000000e+00> : vector<2x8xf32>
    %3 = vector.multi_reduction <add>, %0, %cst [2] : vector<2x8x32xf32> to vector<2x8xf32>
    %4 = vector.shape_cast %3 : vector<2x8xf32> to vector<2x8x1xf32>
    %cst_8 = arith.constant 3.200000e+01 : f32
    %5 = vector.broadcast %cst_8 : f32 to vector<2x8x1xf32>
    %6 = arith.divf %4, %5 : vector<2x8x1xf32>
    %7 = vector.broadcast %6 : vector<2x8x1xf32> to vector<2x8x32xf32>
    %8 = arith.subf %0, %7 : vector<2x8x32xf32>
    %9 = arith.mulf %8, %8 : vector<2x8x32xf32>
    %cst_9 = arith.constant dense<0.000000e+00> : vector<2x8xf32>
    %10 = vector.multi_reduction <add>, %9, %cst_9 [2] : vector<2x8x32xf32> to vector<2x8xf32>
    %11 = vector.shape_cast %10 : vector<2x8xf32> to vector<2x8x1xf32>
    %cst_10 = arith.constant 3.200000e+01 : f32
    %12 = vector.broadcast %cst_10 : f32 to vector<2x8x1xf32>
    %13 = arith.divf %11, %12 : vector<2x8x1xf32>
    %14 = vector.broadcast %6 : vector<2x8x1xf32> to vector<2x8x32xf32>
    %15 = arith.subf %0, %14 : vector<2x8x32xf32>
    %cst_11 = arith.constant 9.99999974E-6 : f32
    %16 = vector.broadcast %cst_11 : f32 to vector<2x8x1xf32>
    %17 = arith.addf %13, %16 : vector<2x8x1xf32>
    %18 = math.rsqrt %17 : vector<2x8x1xf32>
    %19 = vector.broadcast %18 : vector<2x8x1xf32> to vector<2x8x32xf32>
    %20 = arith.mulf %15, %19 : vector<2x8x32xf32>
    %cst_12 = arith.constant dense<0.000000e+00> : vector<2x16xf32>
    %21 = vector.multi_reduction <add>, %1, %cst_12 [2] : vector<2x16x768xf32> to vector<2x16xf32>
    %22 = vector.shape_cast %21 : vector<2x16xf32> to vector<2x16x1xf32>
    %cst_13 = arith.constant 7.680000e+02 : f32
    %23 = vector.broadcast %cst_13 : f32 to vector<2x16x1xf32>
    %24 = arith.divf %22, %23 : vector<2x16x1xf32>
    %25 = vector.broadcast %24 : vector<2x16x1xf32> to vector<2x16x768xf32>
    %26 = arith.subf %1, %25 : vector<2x16x768xf32>
    %27 = arith.mulf %26, %26 : vector<2x16x768xf32>
    %cst_14 = arith.constant dense<0.000000e+00> : vector<2x16xf32>
    %28 = vector.multi_reduction <add>, %27, %cst_14 [2] : vector<2x16x768xf32> to vector<2x16xf32>
    %29 = vector.shape_cast %28 : vector<2x16xf32> to vector<2x16x1xf32>
    %cst_15 = arith.constant 7.680000e+02 : f32
    %30 = vector.broadcast %cst_15 : f32 to vector<2x16x1xf32>
    %31 = arith.divf %29, %30 : vector<2x16x1xf32>
    %32 = vector.broadcast %24 : vector<2x16x1xf32> to vector<2x16x768xf32>
    %33 = arith.subf %1, %32 : vector<2x16x768xf32>
    %cst_16 = arith.constant 9.99999974E-6 : f32
    %34 = vector.broadcast %cst_16 : f32 to vector<2x16x1xf32>
    %35 = arith.addf %31, %34 : vector<2x16x1xf32>
    %36 = math.rsqrt %35 : vector<2x16x1xf32>
    %37 = vector.broadcast %36 : vector<2x16x1xf32> to vector<2x16x768xf32>
    %38 = arith.mulf %33, %37 : vector<2x16x768xf32>
    %39 = vector.shape_cast %20 : vector<2x8x32xf32> to vector<16x32xf32>
    %c0_17 = arith.constant 0 : index
    %c0_18 = arith.constant 0 : index
    %40 = vector.load %arg4[%c0_17, %c0_18] : memref<32x32xf32, #tpu.memory_space<vmem>>, vector<32x32xf32>
    %cst_19 = arith.constant dense<0.000000e+00> : vector<16x32xf32>
    %41 = tpu.matmul %39, %40, %cst_19 {dimension_numbers = #tpu.dot_dimension_numbers<[1], [0], [0], [1], [0, 0, 1, 1], [], []>} : vector<16x32xf32>, vector<32x32xf32>, vector<16x32xf32> -> vector<16x32xf32>
    %c0_20 = arith.constant 0 : index
    %c0_21 = arith.constant 0 : index
    %42 = vector.load %arg7[%c0_20, %c0_21] : memref<2x32xf32, #tpu.memory_space<vmem>>, vector<1x32xf32>
    %43 = vector.shape_cast %42 : vector<1x32xf32> to vector<32xf32>
    %44 = vector.shape_cast %43 : vector<32xf32> to vector<1x32xf32>
    %45 = vector.broadcast %44 : vector<1x32xf32> to vector<16x32xf32>
    %46 = arith.addf %41, %45 : vector<16x32xf32>
    %47 = vector.shape_cast %46 : vector<16x32xf32> to vector<2x8x32xf32>
    %48 = vector.shape_cast %38 : vector<2x16x768xf32> to vector<32x768xf32>
    %c0_22 = arith.constant 0 : index
    %c0_23 = arith.constant 0 : index
    %49 = vector.load %arg5[%c0_22, %c0_23] : memref<768x64xf32, #tpu.memory_space<vmem>>, vector<768x64xf32>
    %cst_24 = arith.constant dense<0.000000e+00> : vector<32x64xf32>
    %50 = tpu.matmul %48, %49, %cst_24 {dimension_numbers = #tpu.dot_dimension_numbers<[1], [0], [0], [1], [0, 0, 1, 1], [], []>} : vector<32x768xf32>, vector<768x64xf32>, vector<32x64xf32> -> vector<32x64xf32>
    %c0_25 = arith.constant 0 : index
    %c0_26 = arith.constant 0 : index
    %51 = vector.load %arg8[%c0_25, %c0_26] : memref<1x64xf32, #tpu.memory_space<vmem>>, vector<1x64xf32>
    %52 = vector.shape_cast %51 : vector<1x64xf32> to vector<64xf32>
    %53 = vector.shape_cast %52 : vector<64xf32> to vector<1x64xf32>
    %54 = vector.broadcast %53 : vector<1x64xf32> to vector<32x64xf32>
    %55 = arith.addf %50, %54 : vector<32x64xf32>
    %56 = vector.extract_strided_slice %55 {offsets = [0, 0], sizes = [32, 32], strides = [1, 1]} : vector<32x64xf32> to vector<32x32xf32>
    %57 = vector.shape_cast %56 : vector<32x32xf32> to vector<2x16x32xf32>
    %58 = vector.extract_strided_slice %55 {offsets = [0, 32], sizes = [32, 32], strides = [1, 1]} : vector<32x64xf32> to vector<32x32xf32>
    %59 = vector.shape_cast %58 : vector<32x32xf32> to vector<2x16x32xf32>
    %cst_27 = arith.constant 1.000000e+04 : f32
    %60 = vector.broadcast %cst_27 : f32 to vector<2x1x16xf32>
    %61 = arith.mulf %60, %2 : vector<2x1x16xf32>
    %cst_28 = arith.constant 1.000000e+04 : f32
    %62 = vector.broadcast %cst_28 : f32 to vector<2x1x16xf32>
    %63 = arith.subf %61, %62 : vector<2x1x16xf32>
    "tpu.trace_start"() <{level = 10 : i32, message = "bnd,bsd->bns"}> : () -> ()
    %cst_29 = arith.constant dense<0.000000e+00> : vector<2x8x16xf32>
    %64 = tpu.matmul %47, %57, %cst_29 {dimension_numbers = #tpu.dot_dimension_numbers<[2], [2], [1], [1], [0, 0, 0, 1, 1, 1], [0], [0]>} : vector<2x8x32xf32>, vector<2x16x32xf32>, vector<2x8x16xf32> -> vector<2x8x16xf32>
    "tpu.trace_stop"() : () -> ()
    %65 = vector.broadcast %63 : vector<2x1x16xf32> to vector<2x8x16xf32>
    %66 = arith.addf %64, %65 : vector<2x8x16xf32>
    %cst_30 = arith.constant dense<0xFF800000> : vector<2x8xf32>
    %67 = vector.multi_reduction <maximumf>, %66, %cst_30 [2] : vector<2x8x16xf32> to vector<2x8xf32>
    %68 = vector.shape_cast %67 : vector<2x8xf32> to vector<2x8x1xf32>
    %69 = vector.broadcast %68 : vector<2x8x1xf32> to vector<2x8x16xf32>
    %70 = arith.subf %66, %69 : vector<2x8x16xf32>
    %71 = math.exp %70 : vector<2x8x16xf32>
    %cst_31 = arith.constant dense<0.000000e+00> : vector<2x8xf32>
    %72 = vector.multi_reduction <add>, %71, %cst_31 [2] : vector<2x8x16xf32> to vector<2x8xf32>
    %73 = vector.shape_cast %72 : vector<2x8xf32> to vector<2x8x1xf32>
    %74 = vector.broadcast %73 : vector<2x8x1xf32> to vector<2x8x16xf32>
    %75 = arith.divf %71, %74 : vector<2x8x16xf32>
    "tpu.trace_start"() <{level = 10 : i32, message = "bns,bsd->bnd"}> : () -> ()
    %cst_32 = arith.constant dense<0.000000e+00> : vector<2x8x32xf32>
    %76 = tpu.matmul %75, %59, %cst_32 {dimension_numbers = #tpu.dot_dimension_numbers<[2], [1], [1], [2], [0, 0, 0, 1, 1, 2], [0], [0]>} : vector<2x8x16xf32>, vector<2x16x32xf32>, vector<2x8x32xf32> -> vector<2x8x32xf32>
    "tpu.trace_stop"() : () -> ()
    %cst_33 = arith.constant dense<0xFF800000> : vector<2x1xf32>
    %77 = vector.multi_reduction <maximumf>, %2, %cst_33 [2] : vector<2x1x16xf32> to vector<2x1xf32>
    %78 = vector.shape_cast %77 : vector<2x1xf32> to vector<2x1x1xf32>
    %cst_34 = arith.constant 0.000000e+00 : f32
    %79 = vector.broadcast %cst_34 : f32 to vector<2x1x1xf32>
    %80 = arith.cmpf ogt, %78, %79 : vector<2x1x1xf32>
    %cst_35 = arith.constant 0.000000e+00 : f32
    %81 = vector.shape_cast %80 : vector<2x1x1xi1> to vector<2x1x1xi1>
    %82 = vector.broadcast %81 : vector<2x1x1xi1> to vector<2x8x32xi1>
    %83 = vector.broadcast %cst_35 : f32 to vector<2x8x32xf32>
    %84 = arith.select %82, %76, %83 : vector<2x8x32xi1>, vector<2x8x32xf32>
    %85 = vector.shape_cast %84 : vector<2x8x32xf32> to vector<16x32xf32>
    %c0_36 = arith.constant 0 : index
    %c0_37 = arith.constant 0 : index
    %86 = vector.load %arg6[%c0_36, %c0_37] : memref<32x32xf32, #tpu.memory_space<vmem>>, vector<32x32xf32>
    %cst_38 = arith.constant dense<0.000000e+00> : vector<16x32xf32>
    %87 = tpu.matmul %85, %86, %cst_38 {dimension_numbers = #tpu.dot_dimension_numbers<[1], [0], [0], [1], [0, 0, 1, 1], [], []>} : vector<16x32xf32>, vector<32x32xf32>, vector<16x32xf32> -> vector<16x32xf32>
    %c1 = arith.constant 1 : index
    %c0_39 = arith.constant 0 : index
    %88 = vector.load %arg7[%c1, %c0_39] : memref<2x32xf32, #tpu.memory_space<vmem>>, vector<1x32xf32>
    %89 = vector.shape_cast %88 : vector<1x32xf32> to vector<32xf32>
    %90 = vector.shape_cast %89 : vector<32xf32> to vector<1x32xf32>
    %91 = vector.broadcast %90 : vector<1x32xf32> to vector<16x32xf32>
    %92 = arith.addf %87, %91 : vector<16x32xf32>
    %93 = vector.shape_cast %92 : vector<16x32xf32> to vector<2x8x32xf32>
    %94 = arith.addf %0, %93 : vector<2x8x32xf32>
    %c0_40 = arith.constant 0 : index
    %c0_41 = arith.constant 0 : index
    %c0_42 = arith.constant 0 : index
    %95 = vector.load %arg9[%c0_40, %c0_41, %c0_42] : memref<2x8x32xf32, #tpu.memory_space<vmem>>, vector<2x8x32xf32>
    tpu.vector_store %arg9[%c0_40, %c0_41, %c0_42], %94 {strides = array<i32>} : memref<2x8x32xf32, #tpu.memory_space<vmem>>, vector<2x8x32xf32>,
    return
  }
  func.func @transform_0(%arg0: i32) -> (i32, i32, i32) {
    %c0_i32 = arith.constant 0 : i32
    %c0_i32_0 = arith.constant 0 : i32
    %c0_i32_1 = arith.constant 0 : i32
    return %arg0, %c0_i32, %c0_i32_0 : i32, i32, i32
  }
  func.func @transform_1(%arg0: i32) -> (i32, i32, i32) {
    %c0_i32 = arith.constant 0 : i32
    %c0_i32_0 = arith.constant 0 : i32
    %c0_i32_1 = arith.constant 0 : i32
    return %arg0, %c0_i32, %c0_i32_0 : i32, i32, i32
  }
  func.func @transform_2(%arg0: i32) -> (i32, i32, i32) {
    %c0_i32 = arith.constant 0 : i32
    %c0_i32_0 = arith.constant 0 : i32
    %c0_i32_1 = arith.constant 0 : i32
    return %arg0, %c0_i32, %c0_i32_0 : i32, i32, i32
  }
  func.func @transform_3(%arg0: i32) -> (i32, i32) {
    %c0_i32 = arith.constant 0 : i32
    %c0_i32_0 = arith.constant 0 : i32
    %c0_i32_1 = arith.constant 0 : i32
    return %c0_i32, %c0_i32_0 : i32, i32
  }
  func.func @transform_4(%arg0: i32) -> (i32, i32) {
    %c0_i32 = arith.constant 0 : i32
    %c0_i32_0 = arith.constant 0 : i32
    %c0_i32_1 = arith.constant 0 : i32
    return %c0_i32, %c0_i32_0 : i32, i32
  }
  func.func @transform_5(%arg0: i32) -> (i32, i32) {
    %c0_i32 = arith.constant 0 : i32
    %c0_i32_0 = arith.constant 0 : i32
    %c0_i32_1 = arith.constant 0 : i32
    return %c0_i32, %c0_i32_0 : i32, i32
  }
  func.func @transform_6(%arg0: i32) -> (i32, i32) {
    %c0_i32 = arith.constant 0 : i32
    %c0_i32_0 = arith.constant 0 : i32
    %c0_i32_1 = arith.constant 0 : i32
    return %c0_i32, %c0_i32_0 : i32, i32
  }
  func.func @transform_7(%arg0: i32) -> (i32, i32) {
    %c0_i32 = arith.constant 0 : i32
    %c0_i32_0 = arith.constant 0 : i32
    %c0_i32_1 = arith.constant 0 : i32
    return %c0_i32, %c0_i32_0 : i32, i32
  }
  func.func @transform_8(%arg0: i32) -> (i32, i32, i32) {
    %c0_i32 = arith.constant 0 : i32
    %c0_i32_0 = arith.constant 0 : i32
    %c0_i32_1 = arith.constant 0 : i32
    return %arg0, %c0_i32, %c0_i32_0 : i32, i32, i32
  }
}

</mosaic_0001>

<llo_original>
// kernel: tpu_custom_call.1
$region0: #{tpu_custom_call.1}
  #allocation0 [shape = 'u32[]', space=smem, size = 0x4, offset = 0x4, fixed_abs, tag = 'smem constant byte address 0x4 - core index']
  #allocation1 [shape = 'u32[144,128]{1,0:T(1,128)}', space=vmem, size = 0x12000, scoped, tag = 'internal scratch']
  %s0 = inlined_call_operand.vmem [shape: f32[4,8,32], index: 0, kind: input, shape index: {}]
  %s1 = inlined_call_operand.vmem [shape: f32[4,16,768], index: 1, kind: input, shape index: {}]
  %s2 = inlined_call_operand.vmem [shape: f32[4,1,16], index: 2, kind: input, shape index: {}]
  %s3 = inlined_call_operand.vmem [shape: f32[32,32], index: 3, kind: input, shape index: {}]
  %s4 = inlined_call_operand.vmem [shape: f32[768,64], index: 4, kind: input, shape index: {}]
  %s5 = inlined_call_operand.vmem [shape: f32[32,32], index: 5, kind: input, shape index: {}]
  %s6 = inlined_call_operand.vmem [shape: f32[2,32], index: 6, kind: input, shape index: {}]
  %s7 = inlined_call_operand.vmem [shape: f32[1,64], index: 7, kind: input, shape index: {}]
  %s8 = inlined_call_operand.hbm [shape: f32[4,8,32], index: 8, kind: output, shape index: {}]
  %s9 = sld [smem:[#allocation0]]
  $region65: #{tpu_custom_call.1} parent=0
    _
  %s11 = ssub.s32 1, %s9
  %s12 = scalar_select 0, %s11, %s9
  $region1: #{tpu_custom_call.1} parent=0
    #allocation2 [shape = 'u8[16384]{0}', space=vmem, size = 0x4000, scoped, tag = 'output window, operand 0']
    #allocation3 [shape = 's32[2]{0}', space=sflag, size = 0x8, scoped, tag = 'scoped memory for tpu_custom_call.1']
    %13 = vsyncpa [#allocation3], 0
    %s14 = scalar_lea.sflag [#allocation3], 1
    %15 = vsyncpa %s14, 0
    loop: start=0, step=1, limit=4
    $region2: #{tpu_custom_call.1} parent=1 // loop_pre_header
      _
    $region3: #{tpu_custom_call.1} parent=1 // loop_header
      %s17 = sphi 0, %s21
      %p18 = scmp.ge.s32.totalorder %s17, 4
      %s27 = sphi 0, %s29
      %s30 = sphi 0, %s27
      %s31 = sphi 0, %s30
      %s47 = sphi 0, %s31
      %s53 = sphi 0, %s55
      %s56 = sphi 0, %s53
      %s57 = sphi 0, %s56
      %s73 = sphi 0, %s57
      %s79 = sphi 0, %s81
      %s82 = sphi 0, %s79
      %s83 = sphi 0, %s82
      %s99 = sphi 0, %s83
      %s103 = sphi 0, %s103
      %s105 = sphi 0, %s103
      %s106 = sphi 0, %s105
      %s120 = sphi 0, %s106
      %s124 = sphi 0, %s124
      %s126 = sphi 0, %s124
      %s127 = sphi 0, %s126
      %s141 = sphi 0, %s127
      %s145 = sphi 0, %s145
      %s147 = sphi 0, %s145
      %s148 = sphi 0, %s147
      %s162 = sphi 0, %s148
      %s166 = sphi 0, %s166
      %s168 = sphi 0, %s166
      %s169 = sphi 0, %s168
      %s183 = sphi 0, %s169
      %s187 = sphi 0, %s187
      %s189 = sphi 0, %s187
      %s190 = sphi 0, %s189
      %s204 = sphi 0, %s190
      %s210 = sphi 0, %s212
      %s213 = sphi 0, %s210
      %s214 = sphi 0, %s213
      %s230 = sphi 0, %s214
    $region4: #{tpu_custom_call.1} parent=1 // loop_header_branch
      %20 = sbr.rel (%p18) target = $region8
    $region5: #{tpu_custom_call.1} parent=1 // loop_body
      %s22 = ssub.s32 %s17, 1
      %s23 = ssub.s32 %s17, 2
      %s24 = sadd.s32 %s17, 1
      %s25 = ssub.s32 %s17, %s24
      %p26 = scmp.eq.s32.totalorder %s25, 0
      %s28 = sadd.s32 %s27, 1
      %s29 = scalar_select %p26, %s27, %s28
      %p32 = pneg %p26
      %p33 = scmp.eq.s32.totalorder %s17, 1
      %p34 = por %p32, %p33
      %p35 = scmp.ne.s32.totalorder %s27, %s30
      %p36 = scmp.eq.s32.totalorder %s17, 0
      %p37 = por %p35, %p36
      %p38 = scmp.ne.s32.totalorder %s27, %s30
      %p39 = scmp.eq.s32.totalorder %s22, 1
      %p40 = por %p38, %p39
      %p41 = scmp.ne.s32.totalorder %s30, %s31
      %p42 = scmp.eq.s32.totalorder %s22, 0
      %p43 = por %p41, %p42
      %p44 = scmp.ne.s32.totalorder %s30, %s31
      %p45 = scmp.eq.s32.totalorder %s23, 1
      %p46 = por %p44, %p45
      %p48 = scmp.ne.s32.totalorder %s31, %s47
      %p49 = scmp.eq.s32.totalorder %s23, 0
      %p50 = por %p48, %p49
      %s51 = ssub.s32 %s17, %s24
      %p52 = scmp.eq.s32.totalorder %s51, 0
      %s54 = sadd.s32 %s53, 1
      %s55 = scalar_select %p52, %s53, %s54
      %p58 = pneg %p52
      %p59 = scmp.eq.s32.totalorder %s17, 1
      %p60 = por %p58, %p59
      %p61 = scmp.ne.s32.totalorder %s53, %s56
      %p62 = scmp.eq.s32.totalorder %s17, 0
      %p63 = por %p61, %p62
      %p64 = scmp.ne.s32.totalorder %s53, %s56
      %p65 = scmp.eq.s32.totalorder %s22, 1
      %p66 = por %p64, %p65
      %p67 = scmp.ne.s32.totalorder %s56, %s57
      %p68 = scmp.eq.s32.totalorder %s22, 0
      %p69 = por %p67, %p68
      %p70 = scmp.ne.s32.totalorder %s56, %s57
      %p71 = scmp.eq.s32.totalorder %s23, 1
      %p72 = por %p70, %p71
      %p74 = scmp.ne.s32.totalorder %s57, %s73
      %p75 = scmp.eq.s32.totalorder %s23, 0
      %p76 = por %p74, %p75
      %s77 = ssub.s32 %s17, %s24
      %p78 = scmp.eq.s32.totalorder %s77, 0
      %s80 = sadd.s32 %s79, 1
      %s81 = scalar_select %p78, %s79, %s80
      %p84 = pneg %p78
      %p85 = scmp.eq.s32.totalorder %s17, 1
      %p86 = por %p84, %p85
      %p87 = scmp.ne.s32.totalorder %s79, %s82
      %p88 = scmp.eq.s32.totalorder %s17, 0
      %p89 = por %p87, %p88
      %p90 = scmp.ne.s32.totalorder %s79, %s82
      %p91 = scmp.eq.s32.totalorder %s22, 1
      %p92 = por %p90, %p91
      %p93 = scmp.ne.s32.totalorder %s82, %s83
      %p94 = scmp.eq.s32.totalorder %s22, 0
      %p95 = por %p93, %p94
      %p96 = scmp.ne.s32.totalorder %s82, %s83
      %p97 = scmp.eq.s32.totalorder %s23, 1
      %p98 = por %p96, %p97
      %p100 = scmp.ne.s32.totalorder %s83, %s99
      %p101 = scmp.eq.s32.totalorder %s23, 0
      %p102 = por %p100, %p101
      %s104 = sadd.s32 %s103, 1
      %p107 = scmp.eq.s32.totalorder %s17, 1
      %p108 = scmp.ne.s32.totalorder %s103, %s105
      %p109 = scmp.eq.s32.totalorder %s17, 0
      %p110 = por %p108, %p109
      %p111 = scmp.ne.s32.totalorder %s103, %s105
      %p112 = scmp.eq.s32.totalorder %s22, 1
      %p113 = por %p111, %p112
      %p114 = scmp.ne.s32.totalorder %s105, %s106
      %p115 = scmp.eq.s32.totalorder %s22, 0
      %p116 = por %p114, %p115
      %p117 = scmp.ne.s32.totalorder %s105, %s106
      %p118 = scmp.eq.s32.totalorder %s23, 1
      %p119 = por %p117, %p118
      %p121 = scmp.ne.s32.totalorder %s106, %s120
      %p122 = scmp.eq.s32.totalorder %s23, 0
      %p123 = por %p121, %p122
      %s125 = sadd.s32 %s124, 1
      %p128 = scmp.eq.s32.totalorder %s17, 1
      %p129 = scmp.ne.s32.totalorder %s124, %s126
      %p130 = scmp.eq.s32.totalorder %s17, 0
      %p131 = por %p129, %p130
      %p132 = scmp.ne.s32.totalorder %s124, %s126
      %p133 = scmp.eq.s32.totalorder %s22, 1
      %p134 = por %p132, %p133
      %p135 = scmp.ne.s32.totalorder %s126, %s127
      %p136 = scmp.eq.s32.totalorder %s22, 0
      %p137 = por %p135, %p136
      %p138 = scmp.ne.s32.totalorder %s126, %s127
      %p139 = scmp.eq.s32.totalorder %s23, 1
      %p140 = por %p138, %p139
      %p142 = scmp.ne.s32.totalorder %s127, %s141
      %p143 = scmp.eq.s32.totalorder %s23, 0
      %p144 = por %p142, %p143
      %s146 = sadd.s32 %s145, 1
      %p149 = scmp.eq.s32.totalorder %s17, 1
      %p150 = scmp.ne.s32.totalorder %s145, %s147
      %p151 = scmp.eq.s32.totalorder %s17, 0
      %p152 = por %p150, %p151
      %p153 = scmp.ne.s32.totalorder %s145, %s147
      %p154 = scmp.eq.s32.totalorder %s22, 1
      %p155 = por %p153, %p154
      %p156 = scmp.ne.s32.totalorder %s147, %s148
      %p157 = scmp.eq.s32.totalorder %s22, 0
      %p158 = por %p156, %p157
      %p159 = scmp.ne.s32.totalorder %s147, %s148
      %p160 = scmp.eq.s32.totalorder %s23, 1
      %p161 = por %p159, %p160
      %p163 = scmp.ne.s32.totalorder %s148, %s162
      %p164 = scmp.eq.s32.totalorder %s23, 0
      %p165 = por %p163, %p164
      %s167 = sadd.s32 %s166, 1
      %p170 = scmp.eq.s32.totalorder %s17, 1
      %p171 = scmp.ne.s32.totalorder %s166, %s168
      %p172 = scmp.eq.s32.totalorder %s17, 0
      %p173 = por %p171, %p172
      %p174 = scmp.ne.s32.totalorder %s166, %s168
      %p175 = scmp.eq.s32.totalorder %s22, 1
      %p176 = por %p174, %p175
      %p177 = scmp.ne.s32.totalorder %s168, %s169
      %p178 = scmp.eq.s32.totalorder %s22, 0
      %p179 = por %p177, %p178
      %p180 = scmp.ne.s32.totalorder %s168, %s169
      %p181 = scmp.eq.s32.totalorder %s23, 1
      %p182 = por %p180, %p181
      %p184 = scmp.ne.s32.totalorder %s169, %s183
      %p185 = scmp.eq.s32.totalorder %s23, 0
      %p186 = por %p184, %p185
      %s188 = sadd.s32 %s187, 1
      %p191 = scmp.eq.s32.totalorder %s17, 1
      %p192 = scmp.ne.s32.totalorder %s187, %s189
      %p193 = scmp.eq.s32.totalorder %s17, 0
      %p194 = por %p192, %p193
      %p195 = scmp.ne.s32.totalorder %s187, %s189
      %p196 = scmp.eq.s32.totalorder %s22, 1
      %p197 = por %p195, %p196
      %p198 = scmp.ne.s32.totalorder %s189, %s190
      %p199 = scmp.eq.s32.totalorder %s22, 0
      %p200 = por %p198, %p199
      %p201 = scmp.ne.s32.totalorder %s189, %s190
      %p202 = scmp.eq.s32.totalorder %s23, 1
      %p203 = por %p201, %p202
      %p205 = scmp.ne.s32.totalorder %s190, %s204
      %p206 = scmp.eq.s32.totalorder %s23, 0
      %p207 = por %p205, %p206
      %s208 = ssub.s32 %s17, %s24
      %p209 = scmp.eq.s32.totalorder %s208, 0
      %s211 = sadd.s32 %s210, 1
      %s212 = scalar_select %p209, %s210, %s211
      %p215 = pneg %p209
      %p216 = scmp.eq.s32.totalorder %s17, 1
      %p217 = por %p215, %p216
      %p218 = scmp.ne.s32.totalorder %s210, %s213
      %p219 = scmp.eq.s32.totalorder %s17, 0
      %p220 = por %p218, %p219
      %p221 = scmp.ne.s32.totalorder %s210, %s213
      %p222 = scmp.eq.s32.totalorder %s22, 1
      %p223 = por %p221, %p222
      %p224 = scmp.ne.s32.totalorder %s213, %s214
      %p225 = scmp.eq.s32.totalorder %s22, 0
      %p226 = por %p224, %p225
      %p227 = scmp.ne.s32.totalorder %s213, %s214
      %p228 = scmp.eq.s32.totalorder %s23, 1
      %p229 = por %p227, %p228
      %p231 = scmp.ne.s32.totalorder %s214, %s230
      %p232 = scmp.eq.s32.totalorder %s23, 0
      %p233 = por %p231, %p232
      %p234 = scmp.le.s32.totalorder 1, %s17
      %p235 = scmp.lt.s32.totalorder %s17, 3
      %p236 = pnand %p234, %p235
      %p237 = pneg %p236
      // Predicated region
      $region9: #{tpu_custom_call.1} parent=5 // pred_check
        _
      $region10: #{tpu_custom_call.1} parent=5 // pred_check_branch
        %239 = sbr.rel (%p236) target = $region12
      $region11: #{tpu_custom_call.1} parent=5 // pred_region
        %s240 = ssub.s32 %s17, 1
        // Predicated region
        $region13: #{tpu_custom_call.1} parent=11 // pred_check
          %p241 = pneg %p116
        $region14: #{tpu_custom_call.1} parent=11 // pred_check_branch
          %243 = sbr.rel (%p241) target = $region16
        $region15: #{tpu_custom_call.1} parent=11 // pred_region
          _
        $region16: #{tpu_custom_call.1} parent=11 // pred_fallthru
          _
        // Predicated region
        $region17: #{tpu_custom_call.1} parent=11 // pred_check
          %p244 = pneg %p137
        $region18: #{tpu_custom_call.1} parent=11 // pred_check_branch
          %246 = sbr.rel (%p244) target = $region20
        $region19: #{tpu_custom_call.1} parent=11 // pred_region
          _
        $region20: #{tpu_custom_call.1} parent=11 // pred_fallthru
          _
        // Predicated region
        $region21: #{tpu_custom_call.1} parent=11 // pred_check
          %p247 = pneg %p158
        $region22: #{tpu_custom_call.1} parent=11 // pred_check_branch
          %249 = sbr.rel (%p247) target = $region24
        $region23: #{tpu_custom_call.1} parent=11 // pred_region
          _
        $region24: #{tpu_custom_call.1} parent=11 // pred_fallthru
          _
        // Predicated region
        $region25: #{tpu_custom_call.1} parent=11 // pred_check
          %p250 = pneg %p179
        $region26: #{tpu_custom_call.1} parent=11 // pred_check_branch
          %252 = sbr.rel (%p250) target = $region28
        $region27: #{tpu_custom_call.1} parent=11 // pred_region
          _
        $region28: #{tpu_custom_call.1} parent=11 // pred_fallthru
          _
        // Predicated region
        $region29: #{tpu_custom_call.1} parent=11 // pred_check
          %p253 = pneg %p200
        $region30: #{tpu_custom_call.1} parent=11 // pred_check_branch
          %255 = sbr.rel (%p253) target = $region32
        $region31: #{tpu_custom_call.1} parent=11 // pred_region
          _
        $region32: #{tpu_custom_call.1} parent=11 // pred_fallthru
          _
      $region12: #{tpu_custom_call.1} parent=5 // pred_fallthru
        _
      %p256 = scmp.lt.s32.totalorder %s17, 2
      // Predicated region
      $region33: #{tpu_custom_call.1} parent=5 // pred_check
        %p257 = pneg %p256
      $region34: #{tpu_custom_call.1} parent=5 // pred_check_branch
        %259 = sbr.rel (%p257) target = $region36
      $region35: #{tpu_custom_call.1} parent=5 // pred_region
        // Predicated region
        $region37: #{tpu_custom_call.1} parent=35 // pred_check
          %p260 = pneg %p37
        $region38: #{tpu_custom_call.1} parent=35 // pred_check_branch
          %262 = sbr.rel (%p260) target = $region40
        $region39: #{tpu_custom_call.1} parent=35 // pred_region
          %s263 = smul.u32 2, %s17
          %p264 = scmp.lt.s32.totalorder %s263, 3
          %s265 = scalar_select %p264, %s263, 3
          %s266 = smul.addr %s265, 8
          %s267 = scalar_lea.vmem %s0, %s266
          %s268 = smul.u32 2, %s17
        $region40: #{tpu_custom_call.1} parent=35 // pred_fallthru
          _
        // Predicated region
        $region41: #{tpu_custom_call.1} parent=35 // pred_check
          %p269 = pneg %p63
        $region42: #{tpu_custom_call.1} parent=35 // pred_check_branch
          %271 = sbr.rel (%p269) target = $region44
        $region43: #{tpu_custom_call.1} parent=35 // pred_region
          %s272 = smul.u32 2, %s17
          %p273 = scmp.lt.s32.totalorder %s272, 3
          %s274 = scalar_select %p273, %s272, 3
          %s275 = smul.addr %s274, 12
          %s276 = smul.addr %s275, 8
          %s277 = scalar_lea.vmem %s1, %s276
          %s278 = smul.u32 2, %s17
        $region44: #{tpu_custom_call.1} parent=35 // pred_fallthru
          _
        // Predicated region
        $region45: #{tpu_custom_call.1} parent=35 // pred_check
          %p279 = pneg %p89
        $region46: #{tpu_custom_call.1} parent=35 // pred_check_branch
          %281 = sbr.rel (%p279) target = $region48
        $region47: #{tpu_custom_call.1} parent=35 // pred_region
          %s282 = smul.u32 2, %s17
          %p283 = scmp.lt.s32.totalorder %s282, 3
          %s284 = scalar_select %p283, %s282, 3
          %s285 = scalar_lea.vmem %s2, %s284
          %s286 = smul.u32 2, %s17
        $region48: #{tpu_custom_call.1} parent=35 // pred_fallthru
          _
      $region36: #{tpu_custom_call.1} parent=5 // pred_fallthru
        _
      %p287 = scmp.le.s32.totalorder 1, %s17
      %p288 = scmp.lt.s32.totalorder %s17, 3
      %p289 = pnand %p287, %p288
      %p290 = pneg %p289
      // Predicated region
      $region49: #{tpu_custom_call.1} parent=5 // pred_check
        _
      $region50: #{tpu_custom_call.1} parent=5 // pred_check_branch
        %292 = sbr.rel (%p289) target = $region52
      $region51: #{tpu_custom_call.1} parent=5 // pred_region
        %s293 = ssub.s32 %s17, 1
        %s294 = smul.u32 2, %s22
        %p295 = scmp.lt.s32.totalorder %s294, 3
        %s296 = scalar_select %p295, %s294, 3
        %s297 = smul.addr %s296, 8
        %s298 = scalar_lea.vmem %s0, %s297
        %p299 = pneg %p43
        %p300 = pneg %p40
        %s301 = smul.u32 2, %s22
        %p302 = scmp.lt.s32.totalorder %s301, 3
        %s303 = scalar_select %p302, %s301, 3
        %s304 = smul.addr %s303, 12
        %s305 = smul.addr %s304, 8
        %s306 = scalar_lea.vmem %s1, %s305
        %p307 = pneg %p69
        %p308 = pneg %p66
        %s309 = smul.u32 2, %s22
        %p310 = scmp.lt.s32.totalorder %s309, 3
        %s311 = scalar_select %p310, %s309, 3
        %s312 = scalar_lea.vmem %s2, %s311
        %p313 = pneg %p95
        %p314 = pneg %p92
        %p315 = pneg %p116
        %p316 = pneg %p113
        %p317 = pneg %p137
        %p318 = pneg %p134
        %p319 = pneg %p158
        %p320 = pneg %p155
        %p321 = pneg %p179
        %p322 = pneg %p176
        %p323 = pneg %p200
        %p324 = pneg %p197
        %p325 = pneg %p226
        %p326 = pneg %p223
        %s327 = sand.u32 %s213, 1
        %s328 = scalar_lea.sflag [#allocation3], %s327
        %s329 = sand.u32 %s213, 1
        %s330 = smul.addr %s329, 16
        %s331 = scalar_lea.vmem [#allocation2], %s330
        %s332 = smul.u32 2, %s22
        %p333 = scmp.lt.s32.totalorder %s332, 3
        %s334 = scalar_select %p333, %s332, 3
        %s335 = smul.addr %s334, 8
        %s336 = scalar_lea.vmem %s0, %s335
        %s337 = smul.u32 2, %s22
        %s338 = smul.u32 2, %s22
        %p339 = scmp.lt.s32.totalorder %s338, 3
        %s340 = scalar_select %p339, %s338, 3
        %s341 = smul.addr %s340, 12
        %s342 = smul.addr %s341, 8
        %s343 = scalar_lea.vmem %s1, %s342
        %s344 = smul.u32 2, %s22
        %s345 = smul.u32 2, %s22
        %p346 = scmp.lt.s32.totalorder %s345, 3
        %s347 = scalar_select %p346, %s345, 3
        %s348 = scalar_lea.vmem %s2, %s347
        %s349 = smul.u32 2, %s22
        %s350 = smul.u32 2, %s22
        %v351 = vld [vmem:[%s336] sm:$0xff]
        %v352 = vld [vmem:[%s336 + $0x8] sm:$0xff]
        %v353 = vld [vmem:[%s343] sm:$0xff]
        %v354 = vld [vmem:[%s343 + $0x8] sm:$0xff]
        %v355 = vld [vmem:[%s343 + $0x10] sm:$0xff]
        %v356 = vld [vmem:[%s343 + $0x18] sm:$0xff]
        %v357 = vld [vmem:[%s343 + $0x20] sm:$0xff]
        %v358 = vld [vmem:[%s343 + $0x28] sm:$0xff]
        %v359 = vld [vmem:[%s343 + $0x30] sm:$0xff]
        %v360 = vld [vmem:[%s343 + $0x38] sm:$0xff]
        %v361 = vld [vmem:[%s343 + $0x40] sm:$0xff]
        %v362 = vld [vmem:[%s343 + $0x48] sm:$0xff]
        %v363 = vld [vmem:[%s343 + $0x50] sm:$0xff]
        %v364 = vld [vmem:[%s343 + $0x58] sm:$0xff]
        %v365 = vld [vmem:[%s343 + $0x60] sm:$0xff]
        %v366 = vld [vmem:[%s343 + $0x68] sm:$0xff]
        %v367 = vld [vmem:[%s343 + $0x70] sm:$0xff]
        %v368 = vld [vmem:[%s343 + $0x78] sm:$0xff]
        %v369 = vld [vmem:[%s343 + $0x80] sm:$0xff]
        %v370 = vld [vmem:[%s343 + $0x88] sm:$0xff]
        %v371 = vld [vmem:[%s343 + $0x90] sm:$0xff]
        %v372 = vld [vmem:[%s343 + $0x98] sm:$0xff]
        %v373 = vld [vmem:[%s343 + $0xa0] sm:$0xff]
        %v374 = vld [vmem:[%s343 + $0xa8] sm:$0xff]
        %v375 = vld [vmem:[%s343 + $0xb0] sm:$0xff]
        %v376 = vld [vmem:[%s343 + $0xb8] sm:$0xff]
        %v377 = vld [vmem:[%s348] sm:$0x1]
        %v378 = vld [vmem:[%s348 + $0x1] sm:$0x1]
        %vm379 = vcmask 261120
        %v380 = vsel %vm379, %v351, 0.0
        %381 = vadd.xlane.f32.xlu0 %v380
        %v382 = vpop.xlane.xlu0 %381
        %v383 = vsel %vm379, %v352, 0.0
        %384 = vadd.xlane.f32.xlu0 %v383
        %v385 = vpop.xlane.xlu0 %384
        %v386 = vrcp.pop 32.0
        %v387 = vmul.f32 %v382, %v386
        %v388 = vmul.f32 %v385, %v386
        %v389 = vsub.f32 %v351, %v387
        %v390 = vsub.f32 %v352, %v388
        %v391 = vmul.f32 %v389, %v389
        %v392 = vmul.f32 %v390, %v390
        %v393 = vsel %vm379, %v391, 0.0
        %394 = vadd.xlane.f32.xlu0 %v393
        %v395 = vpop.xlane.xlu0 %394
        %v396 = vsel %vm379, %v392, 0.0
        %397 = vadd.xlane.f32.xlu0 %v396
        %v398 = vpop.xlane.xlu0 %397
        %v399 = vmul.f32 %v395, %v386
        %v400 = vmul.f32 %v398, %v386
        %v401 = vadd.f32 %v399, 1e-05
        %v402 = vadd.f32 %v400, 1e-05
        %v403 = vrsqrt.pop %v401
        %v404 = vrsqrt.pop %v402
        %v405 = vmul.f32 %v389, %v403
        %v406 = vmul.f32 %v390, %v404
        %v407 = vadd.f32 %v353, %v354
        %v408 = vadd.f32 %v407, %v355
        %v409 = vadd.f32 %v408, %v356
        %v410 = vadd.f32 %v409, %v357
        %v411 = vadd.f32 %v410, %v358
        %412 = vadd.xlane.f32.xlu0 %v411
        %v413 = vpop.xlane.xlu0 %412
        %v414 = vadd.f32 %v359, %v360
        %v415 = vadd.f32 %v414, %v361
        %v416 = vadd.f32 %v415, %v362
        %v417 = vadd.f32 %v416, %v363
        %v418 = vadd.f32 %v417, %v364
        %419 = vadd.xlane.f32.xlu0 %v418
        %v420 = vpop.xlane.xlu0 %419
        %v421 = vadd.f32 %v365, %v366
        %v422 = vadd.f32 %v421, %v367
        %v423 = vadd.f32 %v422, %v368
        %v424 = vadd.f32 %v423, %v369
        %v425 = vadd.f32 %v424, %v370
        %426 = vadd.xlane.f32.xlu0 %v425
        %v427 = vpop.xlane.xlu0 %426
        %v428 = vadd.f32 %v371, %v372
        %v429 = vadd.f32 %v428, %v373
        %v430 = vadd.f32 %v429, %v374
        %v431 = vadd.f32 %v430, %v375
        %v432 = vadd.f32 %v431, %v376
        %433 = vadd.xlane.f32.xlu0 %v432
        %v434 = vpop.xlane.xlu0 %433
        %v435 = vrcp.pop 768.0
        %v436 = vmul.f32 %v413, %v435
        %v437 = vmul.f32 %v420, %v435
        %v438 = vmul.f32 %v427, %v435
        %v439 = vmul.f32 %v434, %v435
        %v440 = vsub.f32 %v353, %v436
        %v441 = vsub.f32 %v354, %v436
        %v442 = vsub.f32 %v355, %v436
        %v443 = vsub.f32 %v356, %v436
        %v444 = vsub.f32 %v357, %v436
        %v445 = vsub.f32 %v358, %v436
        %v446 = vsub.f32 %v359, %v437
        %v447 = vsub.f32 %v360, %v437
        %v448 = vsub.f32 %v361, %v437
        %v449 = vsub.f32 %v362, %v437
        %v450 = vsub.f32 %v363, %v437
        %v451 = vsub.f32 %v364, %v437
        %v452 = vsub.f32 %v365, %v438
        %v453 = vsub.f32 %v366, %v438
        %v454 = vsub.f32 %v367, %v438
        %v455 = vsub.f32 %v368, %v438
        %v456 = vsub.f32 %v369, %v438
        %v457 = vsub.f32 %v370, %v438
        %v458 = vsub.f32 %v371, %v439
        %v459 = vsub.f32 %v372, %v439
        %v460 = vsub.f32 %v373, %v439
        %v461 = vsub.f32 %v374, %v439
        %v462 = vsub.f32 %v375, %v439
        %v463 = vsub.f32 %v376, %v439
        %v464 = vmul.f32 %v440, %v440
        %v465 = vmul.f32 %v441, %v441
        %v466 = vmul.f32 %v442, %v442
        %v467 = vmul.f32 %v443, %v443
        %v468 = vmul.f32 %v444, %v444
        %v469 = vmul.f32 %v445, %v445
        %v470 = vmul.f32 %v446, %v446
        %v471 = vmul.f32 %v447, %v447
        %v472 = vmul.f32 %v448, %v448
        %v473 = vmul.f32 %v449, %v449
        %v474 = vmul.f32 %v450, %v450
        %v475 = vmul.f32 %v451, %v451
        %v476 = vmul.f32 %v452, %v452
        %v477 = vmul.f32 %v453, %v453
        %v478 = vmul.f32 %v454, %v454
        %v479 = vmul.f32 %v455, %v455
        %v480 = vmul.f32 %v456, %v456
        %v481 = vmul.f32 %v457, %v457
        %v482 = vmul.f32 %v458, %v458
        %v483 = vmul.f32 %v459, %v459
        %v484 = vmul.f32 %v460, %v460
        %v485 = vmul.f32 %v461, %v461
        %v486 = vmul.f32 %v462, %v462
        %v487 = vmul.f32 %v463, %v463
        %v488 = vadd.f32 %v464, %v465
        %v489 = vadd.f32 %v488, %v466
        %v490 = vadd.f32 %v489, %v467
        %v491 = vadd.f32 %v490, %v468
        %v492 = vadd.f32 %v491, %v469
        %493 = vadd.xlane.f32.xlu0 %v492
        %v494 = vpop.xlane.xlu0 %493
        %v495 = vadd.f32 %v470, %v471
        %v496 = vadd.f32 %v495, %v472
        %v497 = vadd.f32 %v496, %v473
        %v498 = vadd.f32 %v497, %v474
        %v499 = vadd.f32 %v498, %v475
        %500 = vadd.xlane.f32.xlu0 %v499
        %v501 = vpop.xlane.xlu0 %500
        %v502 = vadd.f32 %v476, %v477
        %v503 = vadd.f32 %v502, %v478
        %v504 = vadd.f32 %v503, %v479
        %v505 = vadd.f32 %v504, %v480
        %v506 = vadd.f32 %v505, %v481
        %507 = vadd.xlane.f32.xlu0 %v506
        %v508 = vpop.xlane.xlu0 %507
        %v509 = vadd.f32 %v482, %v483
        %v510 = vadd.f32 %v509, %v484
        %v511 = vadd.f32 %v510, %v485
        %v512 = vadd.f32 %v511, %v486
        %v513 = vadd.f32 %v512, %v487
        %514 = vadd.xlane.f32.xlu0 %v513
        %v515 = vpop.xlane.xlu0 %514
        %v516 = vmul.f32 %v494, %v435
        %v517 = vmul.f32 %v501, %v435
        %v518 = vmul.f32 %v508, %v435
        %v519 = vmul.f32 %v515, %v435
        %v520 = vadd.f32 %v516, 1e-05
        %v521 = vadd.f32 %v517, 1e-05
        %v522 = vadd.f32 %v518, 1e-05
        %v523 = vadd.f32 %v519, 1e-05
        %v524 = vrsqrt.pop %v520
        %v525 = vrsqrt.pop %v521
        %v526 = vrsqrt.pop %v522
        %v527 = vrsqrt.pop %v523
        %v528 = vmul.f32 %v440, %v524
        %v529 = vmul.f32 %v441, %v524
        %v530 = vmul.f32 %v442, %v524
        %v531 = vmul.f32 %v443, %v524
        %v532 = vmul.f32 %v444, %v524
        %v533 = vmul.f32 %v445, %v524
        %v534 = vmul.f32 %v446, %v525
        %v535 = vmul.f32 %v447, %v525
        %v536 = vmul.f32 %v448, %v525
        %v537 = vmul.f32 %v449, %v525
        %v538 = vmul.f32 %v450, %v525
        %v539 = vmul.f32 %v451, %v525
        %v540 = vmul.f32 %v452, %v526
        %v541 = vmul.f32 %v453, %v526
        %v542 = vmul.f32 %v454, %v526
        %v543 = vmul.f32 %v455, %v526
        %v544 = vmul.f32 %v456, %v526
        %v545 = vmul.f32 %v457, %v526
        %v546 = vmul.f32 %v458, %v527
        %v547 = vmul.f32 %v459, %v527
        %v548 = vmul.f32 %v460, %v527
        %v549 = vmul.f32 %v461, %v527
        %v550 = vmul.f32 %v462, %v527
        %v551 = vmul.f32 %v463, %v527
        %v552 = vld [vmem:[%s3] sm:$0xff]
        %v553 = vld [vmem:[%s3 + $0x8] sm:$0xff]
        %v554 = vld [vmem:[%s3 + $0x10] sm:$0xff]
        %v555 = vld [vmem:[%s3 + $0x18] sm:$0xff]
        %v556 = vld [vmem:[%s6] sm:$0x1]
        %v557 = vlaneseq
        %v558 = vshrl.u32 %v557, 7
        %v559 = vsub.s32 0, %v558
        %v560 = vrot.slane %v556, %v559
        %v562 = vsel %vm379, %v405, 0
        %v565 = vsel %vm379, %v406, 0
        %567 = vmatprep.subr.mxu0 0.0
        %568 = vmatpush1.msra.mxu0 0.0
        %569 = vmatprep.subr.mxu0 0.0
        %570 = vmatpush1.msra.mxu0 0.0
        %571 = vmatprep.subr.mxu0 0.0
        %572 = vmatpush1.msra.mxu0 0.0
        %573 = vmatprep.subr.mxu0 0.0
        %574 = vmatpush1.msra.mxu0 0.0
        %575 = vmatprep.subr.mxu0 0.0
        %576 = vmatpush1.msra.mxu0 0.0
        %577 = vmatprep.subr.mxu0 0.0
        %578 = vmatpush1.msra.mxu0 0.0
        %579 = vmatprep.subr.mxu0 0.0
        %580 = vmatpush1.msra.mxu0 0.0
        %581 = vmatprep.subr.mxu0 0.0
        %582 = vmatpush1.msra.mxu0 0.0
        %583 = vmatprep.subr.mxu0 0.0
        %584 = vmatpush1.msra.mxu0 0.0
        %585 = vmatprep.subr.mxu0 0.0
        %586 = vmatpush1.msra.mxu0 0.0
        %587 = vmatprep.subr.mxu0 0.0
        %588 = vmatpush1.msra.mxu0 0.0
        %589 = vmatprep.subr.mxu0 0.0
        %590 = vmatpush1.msra.mxu0 0.0
        %591 = vmatprep.subr.mxu0 0.0
        %592 = vmatpush1.msra.mxu0 %v555
        %593 = vmatprep.subr.mxu0 0.0
        %594 = vmatpush1.msra.mxu0 %v554
        %595 = vmatprep.subr.mxu0 0.0
        %596 = vmatpush1.msra.mxu0 %v553
        %597 = vmatprep.subr.mxu0 0.0
        %598 = vmatpush1.msra.mxu0 %v552
        %599 = vmatprep.subr.mxu0 0.0
        %600 = vmatpush2.msra.mxu0 0.0
        %601 = vmatprep.subr.mxu0 0.0
        %602 = vmatpush2.msra.mxu0 0.0
        %603 = vmatprep.subr.mxu0 0.0
        %604 = vmatpush2.msra.mxu0 0.0
        %605 = vmatprep.subr.mxu0 0.0
        %606 = vmatpush2.msra.mxu0 0.0
        %607 = vmatprep.subr.mxu0 0.0
        %608 = vmatpush2.msra.mxu0 0.0
        %609 = vmatprep.subr.mxu0 0.0
        %610 = vmatpush2.msra.mxu0 0.0
        %611 = vmatprep.subr.mxu0 0.0
        %612 = vmatpush2.msra.mxu0 0.0
        %613 = vmatprep.subr.mxu0 0.0
        %614 = vmatpush2.msra.mxu0 0.0
        %615 = vmatprep.subr.mxu0 0.0
        %616 = vmatpush2.msra.mxu0 0.0
        %617 = vmatprep.subr.mxu0 0.0
        %618 = vmatpush2.msra.mxu0 0.0
        %619 = vmatprep.subr.mxu0 0.0
        %620 = vmatpush2.msra.mxu0 0.0
        %621 = vmatprep.subr.mxu0 0.0
        %622 = vmatpush2.msra.mxu0 0.0
        %623 = vmatprep.subr.mxu0 0.0
        %624 = vmatpush2.msra.mxu0 0.0
        %625 = vmatprep.subr.mxu0 0.0
        %626 = vmatpush2.msra.mxu0 0.0
        %627 = vmatprep.subr.mxu0 0.0
        %628 = vmatpush2.msra.mxu0 0.0
        %629 = vmatprep.subr.mxu0 0.0
        %630 = vmatpush2.msra.mxu0 0.0
        %631 = vmatprep.mubr.f32.mxu0 0.0
        %632 = vmatmul.mubr.f32.gmra.mxu0 %v562
        %v633 = vpop.f32.mrf.mxu0
        %v634 = vadd.f32 %v560, %v633
        %v635 = vpop.f32.mrf.mxu0
        %636 = vmatprep.mubr.f32.mxu0 0.0
        %637 = vmatmul.mubr.f32.gmra.mxu0 %v565
        %v638 = vpop.f32.mrf.mxu0
        %v639 = vadd.f32 %v560, %v638
        %v640 = vpop.f32.mrf.mxu0
        %641 = vdwg.mxu0
        %v642 = vld [vmem:[%s4] sm:$0xff]
        %v643 = vld [vmem:[%s4 + $0x8] sm:$0xff]
        %v644 = vld [vmem:[%s4 + $0x10] sm:$0xff]
        %v645 = vld [vmem:[%s4 + $0x18] sm:$0xff]
        %v646 = vld [vmem:[%s4 + $0x20] sm:$0xff]
        %v647 = vld [vmem:[%s4 + $0x28] sm:$0xff]
        %v648 = vld [vmem:[%s4 + $0x30] sm:$0xff]
        %v649 = vld [vmem:[%s4 + $0x38] sm:$0xff]
        %v650 = vld [vmem:[%s4 + $0x40] sm:$0xff]
        %v651 = vld [vmem:[%s4 + $0x48] sm:$0xff]
        %v652 = vld [vmem:[%s4 + $0x50] sm:$0xff]
        %v653 = vld [vmem:[%s4 + $0x58] sm:$0xff]
        %v654 = vld [vmem:[%s4 + $0x60] sm:$0xff]
        %v655 = vld [vmem:[%s4 + $0x68] sm:$0xff]
        %v656 = vld [vmem:[%s4 + $0x70] sm:$0xff]
        %v657 = vld [vmem:[%s4 + $0x78] sm:$0xff]
        %v658 = vld [vmem:[%s4 + $0x80] sm:$0xff]
        %v659 = vld [vmem:[%s4 + $0x88] sm:$0xff]
        %v660 = vld [vmem:[%s4 + $0x90] sm:$0xff]
        %v661 = vld [vmem:[%s4 + $0x98] sm:$0xff]
        %v662 = vld [vmem:[%s4 + $0xa0] sm:$0xff]
        %v663 = vld [vmem:[%s4 + $0xa8] sm:$0xff]
        %v664 = vld [vmem:[%s4 + $0xb0] sm:$0xff]
        %v665 = vld [vmem:[%s4 + $0xb8] sm:$0xff]
        %v666 = vld [vmem:[%s4 + $0xc0] sm:$0xff]
        %v667 = vld [vmem:[%s4 + $0xc8] sm:$0xff]
        %v668 = vld [vmem:[%s4 + $0xd0] sm:$0xff]
        %v669 = vld [vmem:[%s4 + $0xd8] sm:$0xff]
        %v670 = vld [vmem:[%s4 + $0xe0] sm:$0xff]
        %v671 = vld [vmem:[%s4 + $0xe8] sm:$0xff]
        %v672 = vld [vmem:[%s4 + $0xf0] sm:$0xff]
        %v673 = vld [vmem:[%s4 + $0xf8] sm:$0xff]
        %v674 = vld [vmem:[%s4 + $0x100] sm:$0xff]
        %v675 = vld [vmem:[%s4 + $0x108] sm:$0xff]
        %v676 = vld [vmem:[%s4 + $0x110] sm:$0xff]
        %v677 = vld [vmem:[%s4 + $0x118] sm:$0xff]
        %v678 = vld [vmem:[%s4 + $0x120] sm:$0xff]
        %v679 = vld [vmem:[%s4 + $0x128] sm:$0xff]
        %v680 = vld [vmem:[%s4 + $0x130] sm:$0xff]
        %v681 = vld [vmem:[%s4 + $0x138] sm:$0xff]
        %v682 = vld [vmem:[%s4 + $0x140] sm:$0xff]
        %v683 = vld [vmem:[%s4 + $0x148] sm:$0xff]
        %v684 = vld [vmem:[%s4 + $0x150] sm:$0xff]
        %v685 = vld [vmem:[%s4 + $0x158] sm:$0xff]
        %v686 = vld [vmem:[%s4 + $0x160] sm:$0xff]
        %v687 = vld [vmem:[%s4 + $0x168] sm:$0xff]
        %v688 = vld [vmem:[%s4 + $0x170] sm:$0xff]
        %v689 = vld [vmem:[%s4 + $0x178] sm:$0xff]
        %v690 = vld [vmem:[%s4 + $0x180] sm:$0xff]
        %v691 = vld [vmem:[%s4 + $0x188] sm:$0xff]
        %v692 = vld [vmem:[%s4 + $0x190] sm:$0xff]
        %v693 = vld [vmem:[%s4 + $0x198] sm:$0xff]
        %v694 = vld [vmem:[%s4 + $0x1a0] sm:$0xff]
        %v695 = vld [vmem:[%s4 + $0x1a8] sm:$0xff]
        %v696 = vld [vmem:[%s4 + $0x1b0] sm:$0xff]
        %v697 = vld [vmem:[%s4 + $0x1b8] sm:$0xff]
        %v698 = vld [vmem:[%s4 + $0x1c0] sm:$0xff]
        %v699 = vld [vmem:[%s4 + $0x1c8] sm:$0xff]
        %v700 = vld [vmem:[%s4 + $0x1d0] sm:$0xff]
        %v701 = vld [vmem:[%s4 + $0x1d8] sm:$0xff]
        %v702 = vld [vmem:[%s4 + $0x1e0] sm:$0xff]
        %v703 = vld [vmem:[%s4 + $0x1e8] sm:$0xff]
        %v704 = vld [vmem:[%s4 + $0x1f0] sm:$0xff]
        %v705 = vld [vmem:[%s4 + $0x1f8] sm:$0xff]
        %v706 = vld [vmem:[%s4 + $0x200] sm:$0xff]
        %v707 = vld [vmem:[%s4 + $0x208] sm:$0xff]
        %v708 = vld [vmem:[%s4 + $0x210] sm:$0xff]
        %v709 = vld [vmem:[%s4 + $0x218] sm:$0xff]
        %v710 = vld [vmem:[%s4 + $0x220] sm:$0xff]
        %v711 = vld [vmem:[%s4 + $0x228] sm:$0xff]
        %v712 = vld [vmem:[%s4 + $0x230] sm:$0xff]
        %v713 = vld [vmem:[%s4 + $0x238] sm:$0xff]
        %v714 = vld [vmem:[%s4 + $0x240] sm:$0xff]
        %v715 = vld [vmem:[%s4 + $0x248] sm:$0xff]
        %v716 = vld [vmem:[%s4 + $0x250] sm:$0xff]
        %v717 = vld [vmem:[%s4 + $0x258] sm:$0xff]
        %v718 = vld [vmem:[%s4 + $0x260] sm:$0xff]
        %v719 = vld [vmem:[%s4 + $0x268] sm:$0xff]
        %v720 = vld [vmem:[%s4 + $0x270] sm:$0xff]
        %v721 = vld [vmem:[%s4 + $0x278] sm:$0xff]
        %v722 = vld [vmem:[%s4 + $0x280] sm:$0xff]
        %v723 = vld [vmem:[%s4 + $0x288] sm:$0xff]
        %v724 = vld [vmem:[%s4 + $0x290] sm:$0xff]
        %v725 = vld [vmem:[%s4 + $0x298] sm:$0xff]
        %v726 = vld [vmem:[%s4 + $0x2a0] sm:$0xff]
        %v727 = vld [vmem:[%s4 + $0x2a8] sm:$0xff]
        %v728 = vld [vmem:[%s4 + $0x2b0] sm:$0xff]
        %v729 = vld [vmem:[%s4 + $0x2b8] sm:$0xff]
        %v730 = vld [vmem:[%s4 + $0x2c0] sm:$0xff]
        %v731 = vld [vmem:[%s4 + $0x2c8] sm:$0xff]
        %v732 = vld [vmem:[%s4 + $0x2d0] sm:$0xff]
        %v733 = vld [vmem:[%s4 + $0x2d8] sm:$0xff]
        %v734 = vld [vmem:[%s4 + $0x2e0] sm:$0xff]
        %v735 = vld [vmem:[%s4 + $0x2e8] sm:$0xff]
        %v736 = vld [vmem:[%s4 + $0x2f0] sm:$0xff]
        %v737 = vld [vmem:[%s4 + $0x2f8] sm:$0xff]
        %v738 = vld [vmem:[%s7] sm:$0x1]
        %v740 = vlaneseq
        %v741 = vshrl.u32 %v740, 7
        %v742 = vsub.s32 0, %v741
        %v743 = vrot.slane %v738, %v742
        %745 = vmatprep.subr.mxu0 0.0
        %746 = vmatpush1.msra.mxu0 %v657
        %747 = vmatprep.subr.mxu0 0.0
        %748 = vmatpush1.msra.mxu0 %v656
        %749 = vmatprep.subr.mxu0 0.0
        %750 = vmatpush1.msra.mxu0 %v655
        %751 = vmatprep.subr.mxu0 0.0
        %752 = vmatpush1.msra.mxu0 %v654
        %753 = vmatprep.subr.mxu0 0.0
        %754 = vmatpush1.msra.mxu0 %v653
        %755 = vmatprep.subr.mxu0 0.0
        %756 = vmatpush1.msra.mxu0 %v652
        %757 = vmatprep.subr.mxu0 0.0
        %758 = vmatpush1.msra.mxu0 %v651
        %759 = vmatprep.subr.mxu0 0.0
        %760 = vmatpush1.msra.mxu0 %v650
        %761 = vmatprep.subr.mxu0 0.0
        %762 = vmatpush1.msra.mxu0 %v649
        %763 = vmatprep.subr.mxu0 0.0
        %764 = vmatpush1.msra.mxu0 %v648
        %765 = vmatprep.subr.mxu0 0.0
        %766 = vmatpush1.msra.mxu0 %v647
        %767 = vmatprep.subr.mxu0 0.0
        %768 = vmatpush1.msra.mxu0 %v646
        %769 = vmatprep.subr.mxu0 0.0
        %770 = vmatpush1.msra.mxu0 %v645
        %771 = vmatprep.subr.mxu0 0.0
        %772 = vmatpush1.msra.mxu0 %v644
        %773 = vmatprep.subr.mxu0 0.0
        %774 = vmatpush1.msra.mxu0 %v643
        %775 = vmatprep.subr.mxu0 0.0
        %776 = vmatpush1.msra.mxu0 %v642
        %777 = vmatprep.subr.mxu0 0.0
        %778 = vmatpush2.msra.mxu0 %v673
        %779 = vmatprep.subr.mxu0 0.0
        %780 = vmatpush2.msra.mxu0 %v672
        %781 = vmatprep.subr.mxu0 0.0
        %782 = vmatpush2.msra.mxu0 %v671
        %783 = vmatprep.subr.mxu0 0.0
        %784 = vmatpush2.msra.mxu0 %v670
        %785 = vmatprep.subr.mxu0 0.0
        %786 = vmatpush2.msra.mxu0 %v669
        %787 = vmatprep.subr.mxu0 0.0
        %788 = vmatpush2.msra.mxu0 %v668
        %789 = vmatprep.subr.mxu0 0.0
        %790 = vmatpush2.msra.mxu0 %v667
        %791 = vmatprep.subr.mxu0 0.0
        %792 = vmatpush2.msra.mxu0 %v666
        %793 = vmatprep.subr.mxu0 0.0
        %794 = vmatpush2.msra.mxu0 %v665
        %795 = vmatprep.subr.mxu0 0.0
        %796 = vmatpush2.msra.mxu0 %v664
        %797 = vmatprep.subr.mxu0 0.0
        %798 = vmatpush2.msra.mxu0 %v663
        %799 = vmatprep.subr.mxu0 0.0
        %800 = vmatpush2.msra.mxu0 %v662
        %801 = vmatprep.subr.mxu0 0.0
        %802 = vmatpush2.msra.mxu0 %v661
        %803 = vmatprep.subr.mxu0 0.0
        %804 = vmatpush2.msra.mxu0 %v660
        %805 = vmatprep.subr.mxu0 0.0
        %806 = vmatpush2.msra.mxu0 %v659
        %807 = vmatprep.subr.mxu0 0.0
        %808 = vmatpush2.msra.mxu0 %v658
        %809 = vmatprep.mubr.f32.mxu0 %v529
        %810 = vmatmul.mubr.f32.gmra.mxu0 %v528
        %v811 = vpop.f32.mrf.mxu0
        %v812 = vadd.f32 %v743, %v811
        %v813 = vpop.f32.mrf.mxu0
        %814 = vmatprep.mubr.f32.mxu0 %v535
        %815 = vmatmul.mubr.f32.gmra.mxu0 %v534
        %v816 = vpop.f32.mrf.mxu0
        %v817 = vadd.f32 %v743, %v816
        %v818 = vpop.f32.mrf.mxu0
        %819 = vmatprep.mubr.f32.mxu0 %v541
        %820 = vmatmul.mubr.f32.gmra.mxu0 %v540
        %v821 = vpop.f32.mrf.mxu0
        %v822 = vadd.f32 %v743, %v821
        %v823 = vpop.f32.mrf.mxu0
        %824 = vmatprep.mubr.f32.mxu0 %v547
        %825 = vmatmul.mubr.f32.gmra.mxu0 %v546
        %v826 = vpop.f32.mrf.mxu0
        %v827 = vadd.f32 %v743, %v826
        %v828 = vpop.f32.mrf.mxu0
        %829 = vdwg.mxu0
        %830 = vmatprep.subr.mxu0 0.0
        %831 = vmatpush1.msra.mxu0 %v689
        %832 = vmatprep.subr.mxu0 0.0
        %833 = vmatpush1.msra.mxu0 %v688
        %834 = vmatprep.subr.mxu0 0.0
        %835 = vmatpush1.msra.mxu0 %v687
        %836 = vmatprep.subr.mxu0 0.0
        %837 = vmatpush1.msra.mxu0 %v686
        %838 = vmatprep.subr.mxu0 0.0
        %839 = vmatpush1.msra.mxu0 %v685
        %840 = vmatprep.subr.mxu0 0.0
        %841 = vmatpush1.msra.mxu0 %v684
        %842 = vmatprep.subr.mxu0 0.0
        %843 = vmatpush1.msra.mxu0 %v683
        %844 = vmatprep.subr.mxu0 0.0
        %845 = vmatpush1.msra.mxu0 %v682
        %846 = vmatprep.subr.mxu0 0.0
        %847 = vmatpush1.msra.mxu0 %v681
        %848 = vmatprep.subr.mxu0 0.0
        %849 = vmatpush1.msra.mxu0 %v680
        %850 = vmatprep.subr.mxu0 0.0
        %851 = vmatpush1.msra.mxu0 %v679
        %852 = vmatprep.subr.mxu0 0.0
        %853 = vmatpush1.msra.mxu0 %v678
        %854 = vmatprep.subr.mxu0 0.0
        %855 = vmatpush1.msra.mxu0 %v677
        %856 = vmatprep.subr.mxu0 0.0
        %857 = vmatpush1.msra.mxu0 %v676
        %858 = vmatprep.subr.mxu0 0.0
        %859 = vmatpush1.msra.mxu0 %v675
        %860 = vmatprep.subr.mxu0 0.0
        %861 = vmatpush1.msra.mxu0 %v674
        %862 = vmatprep.subr.mxu0 0.0
        %863 = vmatpush2.msra.mxu0 %v705
        %864 = vmatprep.subr.mxu0 0.0
        %865 = vmatpush2.msra.mxu0 %v704
        %866 = vmatprep.subr.mxu0 0.0
        %867 = vmatpush2.msra.mxu0 %v703
        %868 = vmatprep.subr.mxu0 0.0
        %869 = vmatpush2.msra.mxu0 %v702
        %870 = vmatprep.subr.mxu0 0.0
        %871 = vmatpush2.msra.mxu0 %v701
        %872 = vmatprep.subr.mxu0 0.0
        %873 = vmatpush2.msra.mxu0 %v700
        %874 = vmatprep.subr.mxu0 0.0
        %875 = vmatpush2.msra.mxu0 %v699
        %876 = vmatprep.subr.mxu0 0.0
        %877 = vmatpush2.msra.mxu0 %v698
        %878 = vmatprep.subr.mxu0 0.0
        %879 = vmatpush2.msra.mxu0 %v697
        %880 = vmatprep.subr.mxu0 0.0
        %881 = vmatpush2.msra.mxu0 %v696
        %882 = vmatprep.subr.mxu0 0.0
        %883 = vmatpush2.msra.mxu0 %v695
        %884 = vmatprep.subr.mxu0 0.0
        %885 = vmatpush2.msra.mxu0 %v694
        %886 = vmatprep.subr.mxu0 0.0
        %887 = vmatpush2.msra.mxu0 %v693
        %888 = vmatprep.subr.mxu0 0.0
        %889 = vmatpush2.msra.mxu0 %v692
        %890 = vmatprep.subr.mxu0 0.0
        %891 = vmatpush2.msra.mxu0 %v691
        %892 = vmatprep.subr.mxu0 0.0
        %893 = vmatpush2.msra.mxu0 %v690
        %894 = vmatprep.mubr.f32.mxu0 %v531
        %895 = vmatmul.mubr.f32.gmra.mxu0 %v530
        %v896 = vpop.f32.mrf.mxu0
        %v897 = vadd.f32 %v812, %v896
        %v898 = vpop.f32.mrf.mxu0
        %899 = vmatprep.mubr.f32.mxu0 %v537
        %900 = vmatmul.mubr.f32.gmra.mxu0 %v536
        %v901 = vpop.f32.mrf.mxu0
        %v902 = vadd.f32 %v817, %v901
        %v903 = vpop.f32.mrf.mxu0
        %904 = vmatprep.mubr.f32.mxu0 %v543
        %905 = vmatmul.mubr.f32.gmra.mxu0 %v542
        %v906 = vpop.f32.mrf.mxu0
        %v907 = vadd.f32 %v822, %v906
        %v908 = vpop.f32.mrf.mxu0
        %909 = vmatprep.mubr.f32.mxu0 %v549
        %910 = vmatmul.mubr.f32.gmra.mxu0 %v548
        %v911 = vpop.f32.mrf.mxu0
        %v912 = vadd.f32 %v827, %v911
        %v913 = vpop.f32.mrf.mxu0
        %914 = vdwg.mxu0
        %915 = vmatprep.subr.mxu0 0.0
        %916 = vmatpush1.msra.mxu0 %v721
        %917 = vmatprep.subr.mxu0 0.0
        %918 = vmatpush1.msra.mxu0 %v720
        %919 = vmatprep.subr.mxu0 0.0
        %920 = vmatpush1.msra.mxu0 %v719
        %921 = vmatprep.subr.mxu0 0.0
        %922 = vmatpush1.msra.mxu0 %v718
        %923 = vmatprep.subr.mxu0 0.0
        %924 = vmatpush1.msra.mxu0 %v717
        %925 = vmatprep.subr.mxu0 0.0
        %926 = vmatpush1.msra.mxu0 %v716
        %927 = vmatprep.subr.mxu0 0.0
        %928 = vmatpush1.msra.mxu0 %v715
        %929 = vmatprep.subr.mxu0 0.0
        %930 = vmatpush1.msra.mxu0 %v714
        %931 = vmatprep.subr.mxu0 0.0
        %932 = vmatpush1.msra.mxu0 %v713
        %933 = vmatprep.subr.mxu0 0.0
        %934 = vmatpush1.msra.mxu0 %v712
        %935 = vmatprep.subr.mxu0 0.0
        %936 = vmatpush1.msra.mxu0 %v711
        %937 = vmatprep.subr.mxu0 0.0
        %938 = vmatpush1.msra.mxu0 %v710
        %939 = vmatprep.subr.mxu0 0.0
        %940 = vmatpush1.msra.mxu0 %v709
        %941 = vmatprep.subr.mxu0 0.0
        %942 = vmatpush1.msra.mxu0 %v708
        %943 = vmatprep.subr.mxu0 0.0
        %944 = vmatpush1.msra.mxu0 %v707
        %945 = vmatprep.subr.mxu0 0.0
        %946 = vmatpush1.msra.mxu0 %v706
        %947 = vmatprep.subr.mxu0 0.0
        %948 = vmatpush2.msra.mxu0 %v737
        %949 = vmatprep.subr.mxu0 0.0
        %950 = vmatpush2.msra.mxu0 %v736
        %951 = vmatprep.subr.mxu0 0.0
        %952 = vmatpush2.msra.mxu0 %v735
        %953 = vmatprep.subr.mxu0 0.0
        %954 = vmatpush2.msra.mxu0 %v734
        %955 = vmatprep.subr.mxu0 0.0
        %956 = vmatpush2.msra.mxu0 %v733
        %957 = vmatprep.subr.mxu0 0.0
        %958 = vmatpush2.msra.mxu0 %v732
        %959 = vmatprep.subr.mxu0 0.0
        %960 = vmatpush2.msra.mxu0 %v731
        %961 = vmatprep.subr.mxu0 0.0
        %962 = vmatpush2.msra.mxu0 %v730
        %963 = vmatprep.subr.mxu0 0.0
        %964 = vmatpush2.msra.mxu0 %v729
        %965 = vmatprep.subr.mxu0 0.0
        %966 = vmatpush2.msra.mxu0 %v728
        %967 = vmatprep.subr.mxu0 0.0
        %968 = vmatpush2.msra.mxu0 %v727
        %969 = vmatprep.subr.mxu0 0.0
        %970 = vmatpush2.msra.mxu0 %v726
        %971 = vmatprep.subr.mxu0 0.0
        %972 = vmatpush2.msra.mxu0 %v725
        %973 = vmatprep.subr.mxu0 0.0
        %974 = vmatpush2.msra.mxu0 %v724
        %975 = vmatprep.subr.mxu0 0.0
        %976 = vmatpush2.msra.mxu0 %v723
        %977 = vmatprep.subr.mxu0 0.0
        %978 = vmatpush2.msra.mxu0 %v722
        %979 = vmatprep.mubr.f32.mxu0 %v533
        %980 = vmatmul.mubr.f32.gmra.mxu0 %v532
        %v981 = vpop.f32.mrf.mxu0
        %v982 = vadd.f32 %v897, %v981
        %v983 = vpop.f32.mrf.mxu0
        %984 = vmatprep.mubr.f32.mxu0 %v539
        %985 = vmatmul.mubr.f32.gmra.mxu0 %v538
        %v986 = vpop.f32.mrf.mxu0
        %v987 = vadd.f32 %v902, %v986
        %v988 = vpop.f32.mrf.mxu0
        %989 = vmatprep.mubr.f32.mxu0 %v545
        %990 = vmatmul.mubr.f32.gmra.mxu0 %v544
        %v991 = vpop.f32.mrf.mxu0
        %v992 = vadd.f32 %v907, %v991
        %v993 = vpop.f32.mrf.mxu0
        %994 = vmatprep.mubr.f32.mxu0 %v551
        %995 = vmatmul.mubr.f32.gmra.mxu0 %v550
        %v996 = vpop.f32.mrf.mxu0
        %v997 = vadd.f32 %v912, %v996
        %v998 = vpop.f32.mrf.mxu0
        %999 = vdwg.mxu0
        %v1000 = vmul.f32 %v377, 10000.0
        %v1001 = vmul.f32 %v378, 10000.0
        %v1002 = vsub.f32 %v1000, 10000.0
        %v1003 = vsub.f32 %v1001, 10000.0
        %v1006 = vlaneseq
        %v1007 = vshrl.u32 %v1006, 7
        %v1008 = vsub.s32 0, %v1007
        %v1009 = vrot.slane %v1002, %v1008
        %v1010 = vlaneseq
        %v1011 = vshrl.u32 %v1010, 7
        %v1012 = vsub.s32 0, %v1011
        %v1013 = vrot.slane %v1003, %v1012
        %v1017 = vsel %vm379, %v634, 0
        %v1020 = vsel %vm379, %v982, 0
        %v1023 = vsel %vm379, %v987, 0
        %1025 = vmatprep.subr.mxu0 0.0
        %1026 = vmatpush1.xpose.msra.mxu0 0.0
        %1027 = vmatprep.subr.mxu0 0.0
        %1028 = vmatpush1.xpose.msra.mxu0 0.0
        %1029 = vmatprep.subr.mxu0 0.0
        %1030 = vmatpush1.xpose.msra.mxu0 0.0
        %1031 = vmatprep.subr.mxu0 0.0
        %1032 = vmatpush1.xpose.msra.mxu0 0.0
        %1033 = vmatprep.subr.mxu0 0.0
        %1034 = vmatpush1.xpose.msra.mxu0 0.0
        %1035 = vmatprep.subr.mxu0 0.0
        %1036 = vmatpush1.xpose.msra.mxu0 0.0
        %1037 = vmatprep.subr.mxu0 0.0
        %1038 = vmatpush1.xpose.msra.mxu0 0.0
        %1039 = vmatprep.subr.mxu0 0.0
        %1040 = vmatpush1.xpose.msra.mxu0 0.0
        %1041 = vmatprep.subr.mxu0 0.0
        %1042 = vmatpush1.xpose.msra.mxu0 0.0
        %1043 = vmatprep.subr.mxu0 0.0
        %1044 = vmatpush1.xpose.msra.mxu0 0.0
        %1045 = vmatprep.subr.mxu0 0.0
        %1046 = vmatpush1.xpose.msra.mxu0 0.0
        %1047 = vmatprep.subr.mxu0 0.0
        %1048 = vmatpush1.xpose.msra.mxu0 0.0
        %1049 = vmatprep.subr.mxu0 0.0
        %1050 = vmatpush1.xpose.msra.mxu0 0.0
        %1051 = vmatprep.subr.mxu0 0.0
        %1052 = vmatpush1.xpose.msra.mxu0 0.0
        %1053 = vmatprep.subr.mxu0 0.0
        %1054 = vmatpush1.xpose.msra.mxu0 %v1023
        %1055 = vmatprep.subr.mxu0 0.0
        %1056 = vmatpush1.xpose.msra.mxu0 %v1020
        %1057 = vmatprep.subr.mxu0 0.0
        %1058 = vmatpush2.xpose.msra.mxu0 0.0
        %1059 = vmatprep.subr.mxu0 0.0
        %1060 = vmatpush2.xpose.msra.mxu0 0.0
        %1061 = vmatprep.subr.mxu0 0.0
        %1062 = vmatpush2.xpose.msra.mxu0 0.0
        %1063 = vmatprep.subr.mxu0 0.0
        %1064 = vmatpush2.xpose.msra.mxu0 0.0
        %1065 = vmatprep.subr.mxu0 0.0
        %1066 = vmatpush2.xpose.msra.mxu0 0.0
        %1067 = vmatprep.subr.mxu0 0.0
        %1068 = vmatpush2.xpose.msra.mxu0 0.0
        %1069 = vmatprep.subr.mxu0 0.0
        %1070 = vmatpush2.xpose.msra.mxu0 0.0
        %1071 = vmatprep.subr.mxu0 0.0
        %1072 = vmatpush2.xpose.msra.mxu0 0.0
        %1073 = vmatprep.subr.mxu0 0.0
        %1074 = vmatpush2.xpose.msra.mxu0 0.0
        %1075 = vmatprep.subr.mxu0 0.0
        %1076 = vmatpush2.xpose.msra.mxu0 0.0
        %1077 = vmatprep.subr.mxu0 0.0
        %1078 = vmatpush2.xpose.msra.mxu0 0.0
        %1079 = vmatprep.subr.mxu0 0.0
        %1080 = vmatpush2.xpose.msra.mxu0 0.0
        %1081 = vmatprep.subr.mxu0 0.0
        %1082 = vmatpush2.xpose.msra.mxu0 0.0
        %1083 = vmatprep.subr.mxu0 0.0
        %1084 = vmatpush2.xpose.msra.mxu0 0.0
        %1085 = vmatprep.subr.mxu0 0.0
        %1086 = vmatpush2.xpose.msra.mxu0 0.0
        %1087 = vmatprep.subr.mxu0 0.0
        %1088 = vmatpush2.xpose.msra.mxu0 0.0
        %1089 = vmatprep.mubr.f32.mxu0 0.0
        %1090 = vmatmul.mubr.f32.gmra.mxu0 %v1017
        %v1091 = vpop.f32.mrf.mxu0
        %v1092 = vadd.f32 %v1009, %v1091
        %v1093 = vpop.f32.mrf.mxu0
        %1094 = vdwg.mxu0
        %v1096 = vsel %vm379, %v639, 0
        %v1099 = vsel %vm379, %v992, 0
        %v1102 = vsel %vm379, %v997, 0
        %1104 = vmatprep.subr.mxu0 0.0
        %1105 = vmatpush1.xpose.msra.mxu0 0.0
        %1106 = vmatprep.subr.mxu0 0.0
        %1107 = vmatpush1.xpose.msra.mxu0 0.0
        %1108 = vmatprep.subr.mxu0 0.0
        %1109 = vmatpush1.xpose.msra.mxu0 0.0
        %1110 = vmatprep.subr.mxu0 0.0
        %1111 = vmatpush1.xpose.msra.mxu0 0.0
        %1112 = vmatprep.subr.mxu0 0.0
        %1113 = vmatpush1.xpose.msra.mxu0 0.0
        %1114 = vmatprep.subr.mxu0 0.0
        %1115 = vmatpush1.xpose.msra.mxu0 0.0
        %1116 = vmatprep.subr.mxu0 0.0
        %1117 = vmatpush1.xpose.msra.mxu0 0.0
        %1118 = vmatprep.subr.mxu0 0.0
        %1119 = vmatpush1.xpose.msra.mxu0 0.0
        %1120 = vmatprep.subr.mxu0 0.0
        %1121 = vmatpush1.xpose.msra.mxu0 0.0
        %1122 = vmatprep.subr.mxu0 0.0
        %1123 = vmatpush1.xpose.msra.mxu0 0.0
        %1124 = vmatprep.subr.mxu0 0.0
        %1125 = vmatpush1.xpose.msra.mxu0 0.0
        %1126 = vmatprep.subr.mxu0 0.0
        %1127 = vmatpush1.xpose.msra.mxu0 0.0
        %1128 = vmatprep.subr.mxu0 0.0
        %1129 = vmatpush1.xpose.msra.mxu0 0.0
        %1130 = vmatprep.subr.mxu0 0.0
        %1131 = vmatpush1.xpose.msra.mxu0 0.0
        %1132 = vmatprep.subr.mxu0 0.0
        %1133 = vmatpush1.xpose.msra.mxu0 %v1102
        %1134 = vmatprep.subr.mxu0 0.0
        %1135 = vmatpush1.xpose.msra.mxu0 %v1099
        %1136 = vmatprep.subr.mxu0 0.0
        %1137 = vmatpush2.xpose.msra.mxu0 0.0
        %1138 = vmatprep.subr.mxu0 0.0
        %1139 = vmatpush2.xpose.msra.mxu0 0.0
        %1140 = vmatprep.subr.mxu0 0.0
        %1141 = vmatpush2.xpose.msra.mxu0 0.0
        %1142 = vmatprep.subr.mxu0 0.0
        %1143 = vmatpush2.xpose.msra.mxu0 0.0
        %1144 = vmatprep.subr.mxu0 0.0
        %1145 = vmatpush2.xpose.msra.mxu0 0.0
        %1146 = vmatprep.subr.mxu0 0.0
        %1147 = vmatpush2.xpose.msra.mxu0 0.0
        %1148 = vmatprep.subr.mxu0 0.0
        %1149 = vmatpush2.xpose.msra.mxu0 0.0
        %1150 = vmatprep.subr.mxu0 0.0
        %1151 = vmatpush2.xpose.msra.mxu0 0.0
        %1152 = vmatprep.subr.mxu0 0.0
        %1153 = vmatpush2.xpose.msra.mxu0 0.0
        %1154 = vmatprep.subr.mxu0 0.0
        %1155 = vmatpush2.xpose.msra.mxu0 0.0
        %1156 = vmatprep.subr.mxu0 0.0
        %1157 = vmatpush2.xpose.msra.mxu0 0.0
        %1158 = vmatprep.subr.mxu0 0.0
        %1159 = vmatpush2.xpose.msra.mxu0 0.0
        %1160 = vmatprep.subr.mxu0 0.0
        %1161 = vmatpush2.xpose.msra.mxu0 0.0
        %1162 = vmatprep.subr.mxu0 0.0
        %1163 = vmatpush2.xpose.msra.mxu0 0.0
        %1164 = vmatprep.subr.mxu0 0.0
        %1165 = vmatpush2.xpose.msra.mxu0 0.0
        %1166 = vmatprep.subr.mxu0 0.0
        %1167 = vmatpush2.xpose.msra.mxu0 0.0
        %1168 = vmatprep.mubr.f32.mxu0 0.0
        %1169 = vmatmul.mubr.f32.gmra.mxu0 %v1096
        %v1170 = vpop.f32.mrf.mxu0
        %v1171 = vadd.f32 %v1013, %v1170
        %v1172 = vpop.f32.mrf.mxu0
        %1173 = vdwg.mxu0
        %vm1174 = vcmask 130048
        %v1175 = vsel %vm1174, %v1092, -inf
        %1176 = vmax.xlane.f32.xlu0 %v1175
        %v1177 = vpop.xlane.xlu0 %1176
        %v1178 = vsel %vm1174, %v1171, -inf
        %1179 = vmax.xlane.f32.xlu0 %v1178
        %v1180 = vpop.xlane.xlu0 %1179
        %v1181 = vsub.f32 %v1092, %v1177
        %v1182 = vsub.f32 %v1171, %v1180
        %v1183 = vmul.f32 %v1181, 1.442695
        %v1184 = vpow.pop %v1183
        %v1185 = vmul.f32 %v1182, 1.442695
        %v1186 = vpow.pop %v1185
        %v1187 = vsel %vm1174, %v1184, 0.0
        %1188 = vadd.xlane.f32.xlu0 %v1187
        %v1189 = vpop.xlane.xlu0 %1188
        %v1190 = vsel %vm1174, %v1186, 0.0
        %1191 = vadd.xlane.f32.xlu0 %v1190
        %v1192 = vpop.xlane.xlu0 %1191
        %v1193 = vrcp.pop %v1189
        %v1194 = vmul.f32 %v1184, %v1193
        %v1195 = vrcp.pop %v1192
        %v1196 = vmul.f32 %v1186, %v1195
        %1197 = vrot.lane.b32.xlu0 %v982, 96
        %v1198 = vpop.permute.xlu0 %1197
        %1199 = vrot.lane.b32.xlu0 %v987, 96
        %v1200 = vpop.permute.xlu0 %1199
        %v1204 = vsel %vm1174, %v1194, 0
        %1206 = vmatprep.subr.mxu0 0.0
        %1207 = vmatpush1.msra.mxu0 0.0
        %1208 = vmatprep.subr.mxu0 0.0
        %1209 = vmatpush1.msra.mxu0 0.0
        %1210 = vmatprep.subr.mxu0 0.0
        %1211 = vmatpush1.msra.mxu0 0.0
        %1212 = vmatprep.subr.mxu0 0.0
        %1213 = vmatpush1.msra.mxu0 0.0
        %1214 = vmatprep.subr.mxu0 0.0
        %1215 = vmatpush1.msra.mxu0 0.0
        %1216 = vmatprep.subr.mxu0 0.0
        %1217 = vmatpush1.msra.mxu0 0.0
        %1218 = vmatprep.subr.mxu0 0.0
        %1219 = vmatpush1.msra.mxu0 0.0
        %1220 = vmatprep.subr.mxu0 0.0
        %1221 = vmatpush1.msra.mxu0 0.0
        %1222 = vmatprep.subr.mxu0 0.0
        %1223 = vmatpush1.msra.mxu0 0.0
        %1224 = vmatprep.subr.mxu0 0.0
        %1225 = vmatpush1.msra.mxu0 0.0
        %1226 = vmatprep.subr.mxu0 0.0
        %1227 = vmatpush1.msra.mxu0 0.0
        %1228 = vmatprep.subr.mxu0 0.0
        %1229 = vmatpush1.msra.mxu0 0.0
        %1230 = vmatprep.subr.mxu0 0.0
        %1231 = vmatpush1.msra.mxu0 0.0
        %1232 = vmatprep.subr.mxu0 0.0
        %1233 = vmatpush1.msra.mxu0 0.0
        %1234 = vmatprep.subr.mxu0 0.0
        %1235 = vmatpush1.msra.mxu0 %v1200
        %1236 = vmatprep.subr.mxu0 0.0
        %1237 = vmatpush1.msra.mxu0 %v1198
        %1238 = vmatprep.subr.mxu0 0.0
        %1239 = vmatpush2.msra.mxu0 0.0
        %1240 = vmatprep.subr.mxu0 0.0
        %1241 = vmatpush2.msra.mxu0 0.0
        %1242 = vmatprep.subr.mxu0 0.0
        %1243 = vmatpush2.msra.mxu0 0.0
        %1244 = vmatprep.subr.mxu0 0.0
        %1245 = vmatpush2.msra.mxu0 0.0
        %1246 = vmatprep.subr.mxu0 0.0
        %1247 = vmatpush2.msra.mxu0 0.0
        %1248 = vmatprep.subr.mxu0 0.0
        %1249 = vmatpush2.msra.mxu0 0.0
        %1250 = vmatprep.subr.mxu0 0.0
        %1251 = vmatpush2.msra.mxu0 0.0
        %1252 = vmatprep.subr.mxu0 0.0
        %1253 = vmatpush2.msra.mxu0 0.0
        %1254 = vmatprep.subr.mxu0 0.0
        %1255 = vmatpush2.msra.mxu0 0.0
        %1256 = vmatprep.subr.mxu0 0.0
        %1257 = vmatpush2.msra.mxu0 0.0
        %1258 = vmatprep.subr.mxu0 0.0
        %1259 = vmatpush2.msra.mxu0 0.0
        %1260 = vmatprep.subr.mxu0 0.0
        %1261 = vmatpush2.msra.mxu0 0.0
        %1262 = vmatprep.subr.mxu0 0.0
        %1263 = vmatpush2.msra.mxu0 0.0
        %1264 = vmatprep.subr.mxu0 0.0
        %1265 = vmatpush2.msra.mxu0 0.0
        %1266 = vmatprep.subr.mxu0 0.0
        %1267 = vmatpush2.msra.mxu0 0.0
        %1268 = vmatprep.subr.mxu0 0.0
        %1269 = vmatpush2.msra.mxu0 0.0
        %1270 = vmatprep.mubr.f32.mxu0 0.0
        %1271 = vmatmul.mubr.f32.gmra.mxu0 %v1204
        %v1272 = vpop.f32.mrf.mxu0
        %v1273 = vadd.f32 0.0, %v1272
        %v1274 = vpop.f32.mrf.mxu0
        %1275 = vdwg.mxu0
        %1276 = vrot.lane.b32.xlu0 %v992, 96
        %v1277 = vpop.permute.xlu0 %1276
        %1278 = vrot.lane.b32.xlu0 %v997, 96
        %v1279 = vpop.permute.xlu0 %1278
        %v1283 = vsel %vm1174, %v1196, 0
        %1285 = vmatprep.subr.mxu0 0.0
        %1286 = vmatpush1.msra.mxu0 0.0
        %1287 = vmatprep.subr.mxu0 0.0
        %1288 = vmatpush1.msra.mxu0 0.0
        %1289 = vmatprep.subr.mxu0 0.0
        %1290 = vmatpush1.msra.mxu0 0.0
        %1291 = vmatprep.subr.mxu0 0.0
        %1292 = vmatpush1.msra.mxu0 0.0
        %1293 = vmatprep.subr.mxu0 0.0
        %1294 = vmatpush1.msra.mxu0 0.0
        %1295 = vmatprep.subr.mxu0 0.0
        %1296 = vmatpush1.msra.mxu0 0.0
        %1297 = vmatprep.subr.mxu0 0.0
        %1298 = vmatpush1.msra.mxu0 0.0
        %1299 = vmatprep.subr.mxu0 0.0
        %1300 = vmatpush1.msra.mxu0 0.0
        %1301 = vmatprep.subr.mxu0 0.0
        %1302 = vmatpush1.msra.mxu0 0.0
        %1303 = vmatprep.subr.mxu0 0.0
        %1304 = vmatpush1.msra.mxu0 0.0
        %1305 = vmatprep.subr.mxu0 0.0
        %1306 = vmatpush1.msra.mxu0 0.0
        %1307 = vmatprep.subr.mxu0 0.0
        %1308 = vmatpush1.msra.mxu0 0.0
        %1309 = vmatprep.subr.mxu0 0.0
        %1310 = vmatpush1.msra.mxu0 0.0
        %1311 = vmatprep.subr.mxu0 0.0
        %1312 = vmatpush1.msra.mxu0 0.0
        %1313 = vmatprep.subr.mxu0 0.0
        %1314 = vmatpush1.msra.mxu0 %v1279
        %1315 = vmatprep.subr.mxu0 0.0
        %1316 = vmatpush1.msra.mxu0 %v1277
        %1317 = vmatprep.subr.mxu0 0.0
        %1318 = vmatpush2.msra.mxu0 0.0
        %1319 = vmatprep.subr.mxu0 0.0
        %1320 = vmatpush2.msra.mxu0 0.0
        %1321 = vmatprep.subr.mxu0 0.0
        %1322 = vmatpush2.msra.mxu0 0.0
        %1323 = vmatprep.subr.mxu0 0.0
        %1324 = vmatpush2.msra.mxu0 0.0
        %1325 = vmatprep.subr.mxu0 0.0
        %1326 = vmatpush2.msra.mxu0 0.0
        %1327 = vmatprep.subr.mxu0 0.0
        %1328 = vmatpush2.msra.mxu0 0.0
        %1329 = vmatprep.subr.mxu0 0.0
        %1330 = vmatpush2.msra.mxu0 0.0
        %1331 = vmatprep.subr.mxu0 0.0
        %1332 = vmatpush2.msra.mxu0 0.0
        %1333 = vmatprep.subr.mxu0 0.0
        %1334 = vmatpush2.msra.mxu0 0.0
        %1335 = vmatprep.subr.mxu0 0.0
        %1336 = vmatpush2.msra.mxu0 0.0
        %1337 = vmatprep.subr.mxu0 0.0
        %1338 = vmatpush2.msra.mxu0 0.0
        %1339 = vmatprep.subr.mxu0 0.0
        %1340 = vmatpush2.msra.mxu0 0.0
        %1341 = vmatprep.subr.mxu0 0.0
        %1342 = vmatpush2.msra.mxu0 0.0
        %1343 = vmatprep.subr.mxu0 0.0
        %1344 = vmatpush2.msra.mxu0 0.0
        %1345 = vmatprep.subr.mxu0 0.0
        %1346 = vmatpush2.msra.mxu0 0.0
        %1347 = vmatprep.subr.mxu0 0.0
        %1348 = vmatpush2.msra.mxu0 0.0
        %1349 = vmatprep.mubr.f32.mxu0 0.0
        %1350 = vmatmul.mubr.f32.gmra.mxu0 %v1283
        %v1351 = vpop.f32.mrf.mxu0
        %v1352 = vadd.f32 0.0, %v1351
        %v1353 = vpop.f32.mrf.mxu0
        %1354 = vdwg.mxu0
        %vm1355 = vcmask 122880
        %v1356 = vsel %vm1355, %v377, -inf
        %1357 = vmax.xlane.f32.xlu0 %v1356
        %v1358 = vpop.xlane.xlu0 %1357
        %v1359 = vsel %vm1355, %v378, -inf
        %1360 = vmax.xlane.f32.xlu0 %v1359
        %v1361 = vpop.xlane.xlu0 %1360
        %vm1362 = vcmp.gt.f32.partialorder %v1358, 0.0
        %vm1363 = vcmp.gt.f32.partialorder %v1361, 0.0
        %v1364 = vsel %vm1362, 1, 0
        %v1365 = vsel %vm1363, 1, 0
        %v1366 = vlaneseq
        %v1367 = vshrl.u32 %v1366, 7
        %v1368 = vsub.s32 0, %v1367
        %v1369 = vrot.slane %v1364, %v1368
        %v1370 = vlaneseq
        %v1371 = vshrl.u32 %v1370, 7
        %v1372 = vsub.s32 0, %v1371
        %v1373 = vrot.slane %v1365, %v1372
        %vm1374 = vcmp.eq.s32.totalorder %v1369, 1
        %vm1375 = vcmp.eq.s32.totalorder %v1373, 1
        %v1376 = vsel %vm1374, %v1273, 0.0
        %v1377 = vsel %vm1375, %v1352, 0.0
        %v1378 = vld [vmem:[%s5] sm:$0xff]
        %v1379 = vld [vmem:[%s5 + $0x8] sm:$0xff]
        %v1380 = vld [vmem:[%s5 + $0x10] sm:$0xff]
        %v1381 = vld [vmem:[%s5 + $0x18] sm:$0xff]
        %v1382 = vld [vmem:[%s6 + $0x1] sm:$0x1]
        %v1383 = vlaneseq
        %v1384 = vshrl.u32 %v1383, 7
        %v1385 = vsub.s32 0, %v1384
        %v1386 = vrot.slane %v1382, %v1385
        %v1388 = vsel %vm379, %v1376, 0
        %v1391 = vsel %vm379, %v1377, 0
        %1393 = vmatprep.subr.mxu0 0.0
        %1394 = vmatpush1.msra.mxu0 0.0
        %1395 = vmatprep.subr.mxu0 0.0
        %1396 = vmatpush1.msra.mxu0 0.0
        %1397 = vmatprep.subr.mxu0 0.0
        %1398 = vmatpush1.msra.mxu0 0.0
        %1399 = vmatprep.subr.mxu0 0.0
        %1400 = vmatpush1.msra.mxu0 0.0
        %1401 = vmatprep.subr.mxu0 0.0
        %1402 = vmatpush1.msra.mxu0 0.0
        %1403 = vmatprep.subr.mxu0 0.0
        %1404 = vmatpush1.msra.mxu0 0.0
        %1405 = vmatprep.subr.mxu0 0.0
        %1406 = vmatpush1.msra.mxu0 0.0
        %1407 = vmatprep.subr.mxu0 0.0
        %1408 = vmatpush1.msra.mxu0 0.0
        %1409 = vmatprep.subr.mxu0 0.0
        %1410 = vmatpush1.msra.mxu0 0.0
        %1411 = vmatprep.subr.mxu0 0.0
        %1412 = vmatpush1.msra.mxu0 0.0
        %1413 = vmatprep.subr.mxu0 0.0
        %1414 = vmatpush1.msra.mxu0 0.0
        %1415 = vmatprep.subr.mxu0 0.0
        %1416 = vmatpush1.msra.mxu0 0.0
        %1417 = vmatprep.subr.mxu0 0.0
        %1418 = vmatpush1.msra.mxu0 %v1381
        %1419 = vmatprep.subr.mxu0 0.0
        %1420 = vmatpush1.msra.mxu0 %v1380
        %1421 = vmatprep.subr.mxu0 0.0
        %1422 = vmatpush1.msra.mxu0 %v1379
        %1423 = vmatprep.subr.mxu0 0.0
        %1424 = vmatpush1.msra.mxu0 %v1378
        %1425 = vmatprep.subr.mxu0 0.0
        %1426 = vmatpush2.msra.mxu0 0.0
        %1427 = vmatprep.subr.mxu0 0.0
        %1428 = vmatpush2.msra.mxu0 0.0
        %1429 = vmatprep.subr.mxu0 0.0
        %1430 = vmatpush2.msra.mxu0 0.0
        %1431 = vmatprep.subr.mxu0 0.0
        %1432 = vmatpush2.msra.mxu0 0.0
        %1433 = vmatprep.subr.mxu0 0.0
        %1434 = vmatpush2.msra.mxu0 0.0
        %1435 = vmatprep.subr.mxu0 0.0
        %1436 = vmatpush2.msra.mxu0 0.0
        %1437 = vmatprep.subr.mxu0 0.0
        %1438 = vmatpush2.msra.mxu0 0.0
        %1439 = vmatprep.subr.mxu0 0.0
        %1440 = vmatpush2.msra.mxu0 0.0
        %1441 = vmatprep.subr.mxu0 0.0
        %1442 = vmatpush2.msra.mxu0 0.0
        %1443 = vmatprep.subr.mxu0 0.0
        %1444 = vmatpush2.msra.mxu0 0.0
        %1445 = vmatprep.subr.mxu0 0.0
        %1446 = vmatpush2.msra.mxu0 0.0
        %1447 = vmatprep.subr.mxu0 0.0
        %1448 = vmatpush2.msra.mxu0 0.0
        %1449 = vmatprep.subr.mxu0 0.0
        %1450 = vmatpush2.msra.mxu0 0.0
        %1451 = vmatprep.subr.mxu0 0.0
        %1452 = vmatpush2.msra.mxu0 0.0
        %1453 = vmatprep.subr.mxu0 0.0
        %1454 = vmatpush2.msra.mxu0 0.0
        %1455 = vmatprep.subr.mxu0 0.0
        %1456 = vmatpush2.msra.mxu0 0.0
        %1457 = vmatprep.mubr.f32.mxu0 0.0
        %1458 = vmatmul.mubr.f32.gmra.mxu0 %v1388
        %v1459 = vpop.f32.mrf.mxu0
        %v1460 = vadd.f32 %v1386, %v1459
        %v1461 = vpop.f32.mrf.mxu0
        %1462 = vmatprep.mubr.f32.mxu0 0.0
        %1463 = vmatmul.mubr.f32.gmra.mxu0 %v1391
        %v1464 = vpop.f32.mrf.mxu0
        %v1465 = vadd.f32 %v1386, %v1464
        %v1466 = vpop.f32.mrf.mxu0
        %1467 = vdwg.mxu0
        %v1468 = vadd.f32 %v351, %v1460
        %v1469 = vadd.f32 %v352, %v1465
        %1470 = vst.msk [vmem:[%s331] sm:$0xff] %vm379, %v1468
        %1471 = vst.msk [vmem:[%s331 + $0x8] sm:$0xff] %vm379, %v1469
        %s1472 = sand.u32 %s213, 1
        %s1473 = scalar_lea.sflag [#allocation3], %s1472
        %s1474 = sand.u32 %s213, 1
        %s1475 = smul.addr %s1474, 16
        %s1476 = scalar_lea.vmem [#allocation2], %s1475
        // Predicated region
        $region53: #{tpu_custom_call.1} parent=51 // pred_check
          %p1477 = pneg %p223
        $region54: #{tpu_custom_call.1} parent=51 // pred_check_branch
          %1479 = sbr.rel (%p1477) target = $region56
        $region55: #{tpu_custom_call.1} parent=51 // pred_region
          %s1480 = smul.u32 2, %s22
          %s1482 = ssub.s32 256, 256
          %1483 = vsyncadd %s1473, %s1482
          %s1484 = smul.addr %s1480, 128
          %s1485 = scalar_lea.hbm %s8, %s1484
          %s1486 = sshll.u32 %s1476, 4
          %s1487 = int_to_ptr.vmem [resolvable:$true] %s1486
          %1492 = dma.vmem_to_hbm [thread:$0]  %s1487, 256, %s1485, %s1473, 128, 128, 8
        $region56: #{tpu_custom_call.1} parent=51 // pred_fallthru
          _
      $region52: #{tpu_custom_call.1} parent=5 // pred_fallthru
        _
      %p1493 = scmp.le.s32.totalorder 2, %s17
      // Predicated region
      $region57: #{tpu_custom_call.1} parent=5 // pred_check
        %p1494 = pneg %p1493
      $region58: #{tpu_custom_call.1} parent=5 // pred_check_branch
        %1496 = sbr.rel (%p1494) target = $region60
      $region59: #{tpu_custom_call.1} parent=5 // pred_region
        %s1497 = ssub.s32 %s17, 2
        // Predicated region
        $region61: #{tpu_custom_call.1} parent=59 // pred_check
          %p1498 = pneg %p229
        $region62: #{tpu_custom_call.1} parent=59 // pred_check_branch
          %1500 = sbr.rel (%p1498) target = $region64
        $region63: #{tpu_custom_call.1} parent=59 // pred_region
          %s1501 = sand.u32 %s214, 1
          %s1502 = scalar_lea.sflag [#allocation3], %s1501
          %s1503 = sand.u32 %s214, 1
          %s1504 = smul.addr %s1503, 16
          %s1505 = scalar_lea.vmem [#allocation2], %s1504
          %1506 = dma.done %s1502, 256
        $region64: #{tpu_custom_call.1} parent=59 // pred_fallthru
          _
      $region60: #{tpu_custom_call.1} parent=5 // pred_fallthru
        _
    $region6: #{tpu_custom_call.1} parent=1 // loop_footer
      %s21 = sadd.s32 1, %s17
    $region7: #{tpu_custom_call.1} parent=1 // loop_footer_branch
      %16 = sbr.rel target = $region3
    $region8: #{tpu_custom_call.1} parent=1 // loop_exit
      _
    %1507 = vsyncpa [#allocation3], 1
    %s1508 = scalar_lea.sflag [#allocation3], 1
    %1509 = vsyncpa %s1508, 1

</llo_original>
